<compile_context>
chip_gen: v5e
topology: v5e:2x2
jax: 0.10.0
libtpu: 0.0.40
codegen_flags: <defaults>
</compile_context>

<pallas_src>
import functools
import math

import jax
import jax.numpy as jnp
from jax.experimental import pallas as pl
from jax.experimental.pallas import tpu as pltpu

WIDTH = 8                      # 64 in the real ResNet-152 (scaled down 8x)
EXPANSION = 4
BLOCKS = (3, 8, 36, 3)         # ResNet-152 block counts
STAGE_STRIDES = (1, 2, 2, 2)

_MM_ROW_CAP = 1024             # max M-tile rows; keeps double-buffered blocks far
                               # under v5e's 16 MiB scoped / v7x's 64 MiB VMEM
                               # even at real ResNet widths, so no vmem_limit
                               # override is needed on any generation.


# ----------------------------- Pallas kernels ------------------------------

def _mm_bn_kernel(a_ref, b_ref, s_ref, t_ref, o_ref, *, relu):
    """out = [relu](A @ B * scale + shift); A/B bf16, f32 accumulation."""
    acc = jnp.dot(a_ref[...], b_ref[...], preferred_element_type=jnp.float32)
    y = acc * s_ref[...] + t_ref[...]
    if relu:
        y = jnp.maximum(y, 0.0)
    o_ref[...] = y.astype(o_ref.dtype)


def _mm_bn_add_relu_kernel(a_ref, b_ref, s_ref, t_ref, r_ref, o_ref):
    """Fused bottleneck tail: out = relu(A @ B * scale + shift + residual)."""
    acc = jnp.dot(a_ref[...], b_ref[...], preferred_element_type=jnp.float32)
    y = acc * s_ref[...] + t_ref[...] + r_ref[...].astype(jnp.float32)
    o_ref[...] = jnp.maximum(y, 0.0).astype(o_ref.dtype)


def _conv3x3_s1_kernel(x_ref, w_ref, s_ref, t_ref, o_ref, acc_ref, *, wpp):
    """Stride-1, pad-1 3x3 conv + folded BN + ReLU for one image.

    x_ref : (Hp*Wpp, C) zero-padded NHWC image flattened over (H, W)
            (H padded by (1, 2), W padded by (1, 1) => Wpp = Wo + 2).
    w_ref : (9, C, O) per-tap weights, tap index = kh * 3 + kw.
    o_ref : (Ho*Wpp, O) "wide" output; row h*Wpp + w is the conv output at
            (h, w) for w < Wo; the last two columns of each row are harmless
            wrap-around garbage dropped by the caller.
    """
    n_rows = acc_ref.shape[0]
    for k in range(9):                               # static unroll: 9 taps
        kh, kw = divmod(k, 3)
        a = x_ref[pl.ds(kh * wpp + kw, n_rows), :]   # static contiguous slice
        contrib = jnp.dot(a, w_ref[k], preferred_element_type=jnp.float32)
        if k == 0:
            acc_ref[...] = contrib
        else:
            acc_ref[...] += contrib
    y = jnp.maximum(acc_ref[...] * s_ref[...] + t_ref[...], 0.0)
    o_ref[...] = y.astype(o_ref.dtype)


def _avgpool_kernel(x_ref, o_ref):
    """x_ref: (B, 49, ct) -> o_ref: (B, ct); lane-dense, channel-tiled output."""
    inv = 1.0 / x_ref.shape[1]
    for i in range(x_ref.shape[0]):
        row = jnp.sum(x_ref[i].astype(jnp.float32), axis=0, keepdims=True) * inv
        o_ref[pl.ds(i, 1), :] = row


# --------------------------- Pallas call wrappers ---------------------------

def _pick_bm(m, cap=_MM_ROW_CAP, mult=16):
    """Largest multiple of `mult` that divides m and is <= cap; else full m."""
    best = 0
    d = mult
    while d <= min(m, cap):
        if m % d == 0:
            best = d
        d += mult
    return best if best else m


def matmul_bn_act(a, b, scale, shift, *, relu, residual=None,
                  out_dtype=jnp.bfloat16):
    """(M,K)@(K,O) + folded BN (+ residual add) (+ ReLU), tiled over M."""
    m, k = a.shape
    o = b.shape[1]
    bm = _pick_bm(m)
    in_specs = [
        pl.BlockSpec((bm, k), lambda i: (i, 0)),
        pl.BlockSpec((k, o), lambda i: (0, 0)),
        pl.BlockSpec((1, o), lambda i: (0, 0)),
        pl.BlockSpec((1, o), lambda i: (0, 0)),
    ]
    args = [a, b, scale.reshape(1, o), shift.reshape(1, o)]
    if residual is None:
        kernel = functools.partial(_mm_bn_kernel, relu=relu)
    else:
        kernel = _mm_bn_add_relu_kernel
        in_specs.append(pl.BlockSpec((bm, o), lambda i: (i, 0)))
        args.append(residual)
    return pl.pallas_call(
        kernel,
        out_shape=jax.ShapeDtypeStruct((m, o), out_dtype),
        grid=(m // bm,),
        in_specs=in_specs,
        out_specs=pl.BlockSpec((bm, o), lambda i: (i, 0)),
        compiler_params=pltpu.CompilerParams(dimension_semantics=("parallel",)),
    )(*args)


@functools.partial(jax.jit, static_argnames=("stride", "relu"))
def conv1x1_bn(x, b, scale, shift, *, stride=1, relu=True, residual=None):
    """1x1 conv + folded BN (+ fused residual add + ReLU).  x NHWC bf16, b (C,O)."""
    if stride > 1:
        x = x[:, ::stride, ::stride, :]
    n, h, w, c = x.shape
    a = x.reshape(n * h * w, c)
    r = None
    if residual is not None:
        r = residual.reshape(n * h * w, residual.shape[-1])
    y = matmul_bn_act(a, b, scale, shift, relu=relu, residual=r)
    return y.reshape(n, h, w, -1)


@jax.jit
def conv3x3_s1_bn_relu(x, w, scale, shift):
    """Stride-1, pad-1 3x3 conv + folded BN + ReLU.  x NHWC bf16, w (3,3,C,O)."""
    n, ho, wo, c = x.shape
    o = w.shape[-1]
    wpp = wo + 2                     # padded width == wide-output row width
    hp = ho + 3                      # 1 top pad + 1 bottom pad + 1 wrap row
    xp = jnp.pad(x, ((0, 0), (1, 2), (1, 1), (0, 0)))
    xf = xp.reshape(n, hp * wpp, c)  # free reshape, no transpose
    w9 = w.reshape(9, c, o)
    n_rows = ho * wpp
    out = pl.pallas_call(
        functools.partial(_conv3x3_s1_kernel, wpp=wpp),
        out_shape=jax.ShapeDtypeStruct((n, n_rows, o), jnp.bfloat16),
        grid=(n,),
        in_specs=[
            pl.BlockSpec((None, hp * wpp, c), lambda i: (i, 0, 0)),
            pl.BlockSpec((9, c, o), lambda i: (0, 0, 0)),
            pl.BlockSpec((1, o), lambda i: (0, 0)),
            pl.BlockSpec((1, o), lambda i: (0, 0)),
        ],
        out_specs=pl.BlockSpec((None, n_rows, o), lambda i: (i, 0, 0)),
        scratch_shapes=[pltpu.VMEM((n_rows, o), jnp.float32)],
        compiler_params=pltpu.CompilerParams(dimension_semantics=("parallel",)),
    )(xf, w9, scale.reshape(1, o), shift.reshape(1, o))
    # Drop the two wrap-around columns of every output row.
    return out.reshape(n, ho, wpp, o)[:, :, :wo, :]


@functools.partial(jax.jit, static_argnames=("stride", "padding", "relu"))
def conv_im2col_bn(x, w, scale, shift, *, stride, padding, relu):
    """General conv via XLA im2col + Pallas matmul.  Only used for the 7x7
    stem and the three stride-2 3x3 convs (4 of ~154 convs).  x NHWC bf16."""
    n, h, wd, c = x.shape
    kh_, kw_, _, o = w.shape
    ho = (h + 2 * padding - kh_) // stride + 1
    wo = (wd + 2 * padding - kw_) // stride + 1
    xp = jnp.pad(x, ((0, 0), (padding, padding), (padding, padding), (0, 0))) \
        if padding else x
    cols = [xp[:, kh:kh + stride * ho:stride, kw:kw + stride * wo:stride, :]
            for kh in range(kh_) for kw in range(kw_)]
    patches = jnp.stack(cols, axis=3)                 # (N, Ho, Wo, KH*KW, C)
    a = patches.reshape(n * ho * wo, kh_ * kw_ * c)
    b = w.reshape(kh_ * kw_ * c, o)
    y = matmul_bn_act(a, b, scale, shift, relu=relu)
    return y.reshape(n, ho, wo, o)


@jax.jit
def maxpool_3x3_s2(x):
    """MaxPool2d(3, stride=2, padding=1), NHWC.
    # TODO(synk): reduction left to fused XLA elementwise max (pure-bandwidth
    # op; avoids materialising a 9x stacked copy in HBM)."""
    n, h, w, c = x.shape
    ho = (h + 2 - 3) // 2 + 1
    wo = (w + 2 - 3) // 2 + 1
    neg = jnp.finfo(x.dtype).min
    xp = jnp.pad(x, ((0, 0), (1, 1), (1, 1), (0, 0)), constant_values=neg)
    out = None
    for kh in range(3):
        for kw in range(3):
            v = xp[:, kh:kh + 2 * ho:2, kw:kw + 2 * wo:2, :]
            out = v if out is None else jnp.maximum(out, v)
    return out


@jax.jit
def avgpool7_flatten(x):
    """AvgPool2d(7) + .view(B, -1): lane-dense (B, C) output, tiled over C."""
    n, h, w, c = x.shape
    assert h == 7 and w == 7, "AvgPool2d(7) expects a 7x7 feature map"
    x3 = x.reshape(n, h * w, c)
    ct = 128 if c % 128 == 0 else c
    return pl.pallas_call(
        _avgpool_kernel,
        out_shape=jax.ShapeDtypeStruct((n, c), jnp.float32),
        grid=(c // ct,),
        in_specs=[pl.BlockSpec((n, h * w, ct), lambda j: (0, 0, j))],
        out_specs=pl.BlockSpec((n, ct), lambda j: (0, j)),
        compiler_params=pltpu.CompilerParams(dimension_semantics=("parallel",)),
    )(x3)


# ----------------------------- Parameter setup ------------------------------

class _KeyGen:
    def __init__(self, seed=0):
        self._key = jax.random.PRNGKey(seed)
        self._i = 0

    def __call__(self):
        self._i += 1
        return jax.random.fold_in(self._key, self._i)


def _conv_w(key, kh, kw, c, o):
    fan_in = c * kh * kw
    w = jax.random.normal(key, (kh, kw, c, o), jnp.float32) * math.sqrt(2.0 / fan_in)
    return w.astype(jnp.bfloat16)


def _bn_init(key, c):
    k1, k2 = jax.random.split(key)
    # Folded eval-mode BN: y = x * scale + shift (scale kept modest so the deep
    # residual stack stays numerically tame with random weights).
    scale = 0.2 * (1.0 + 0.1 * jax.random.normal(k1, (c,), jnp.float32))
    shift = 0.02 * jax.random.normal(k2, (c,), jnp.float32)
    return scale, shift


def build_params(width=WIDTH, blocks=BLOCKS):
    kg = _KeyGen(0)
    params = {"stem_w": _conv_w(kg(), 7, 7, 3, width)}
    params["stem_s"], params["stem_t"] = _bn_init(kg(), width)

    stages = []
    inplanes = width
    for si, (nb, stride0) in enumerate(zip(blocks, STAGE_STRIDES)):
        planes = width * (2 ** si)
        out_ch = planes * EXPANSION
        blist = []
        for bi in range(nb):
            stride = stride0 if bi == 0 else 1
            blk = {"stride": stride}
            blk["b1"] = _conv_w(kg(), 1, 1, inplanes, planes).reshape(inplanes, planes)
            blk["s1"], blk["t1"] = _bn_init(kg(), planes)
            blk["w2"] = _conv_w(kg(), 3, 3, planes, planes)        # (3,3,C,O)
            blk["s2"], blk["t2"] = _bn_init(kg(), planes)
            blk["b3"] = _conv_w(kg(), 1, 1, planes, out_ch).reshape(planes, out_ch)
            blk["s3"], blk["t3"] = _bn_init(kg(), out_ch)
            if bi == 0 and (stride != 1 or inplanes != out_ch):
                blk["bd"] = _conv_w(kg(), 1, 1, inplanes, out_ch).reshape(inplanes, out_ch)
                blk["sd"], blk["td"] = _bn_init(kg(), out_ch)
            blist.append(blk)
            inplanes = out_ch
        stages.append(blist)
    params["stages"] = stages
    return params


# -------------------------------- Forward -----------------------------------

def _bottleneck(x, p):
    out = conv1x1_bn(x, p["b1"], p["s1"], p["t1"], relu=True)
    if p["stride"] == 1:
        out = conv3x3_s1_bn_relu(out, p["w2"], p["s2"], p["t2"])
    else:
        out = conv_im2col_bn(out, p["w2"], p["s2"], p["t2"],
                             stride=p["stride"], padding=1, relu=True)
    if "bd" in p:
        identity = conv1x1_bn(x, p["bd"], p["sd"], p["td"],
                              stride=p["stride"], relu=False)
    else:
        identity = x
    # conv3 (1x1) + BN + residual add + ReLU fused in one Pallas kernel.
    return conv1x1_bn(out, p["b3"], p["s3"], p["t3"], relu=True,
                      residual=identity)


def resnet152_encoder_forward(image, params):
    """image: (B, 3, 224, 224) f32 NCHW  ->  global features (B, WIDTH*8*EXPANSION)."""
    x = jnp.transpose(image, (0, 2, 3, 1)).astype(jnp.bfloat16)   # one-time NHWC
    x = conv_im2col_bn(x, params["stem_w"], params["stem_s"], params["stem_t"],
                       stride=2, padding=3, relu=True)            # (B,112,112,W)
    x = maxpool_3x3_s2(x)                                         # (B, 56, 56,W)
    for stage in params["stages"]:
        for blk in stage:
            x = _bottleneck(x, blk)
    # x: (B, 7, 7, WIDTH*8*EXPANSION)
    return avgpool7_flatten(x)                                    # (B, W*8*4) f32


# --------------------------------- Demo --------------------------------------

if __name__ == "__main__":
    B = 2
    key = jax.random.PRNGKey(0)
    image = jax.random.normal(key, (B, 3, 224, 224), jnp.float32)

    params = build_params()
    feats = resnet152_encoder_forward(image, params)
    feats = jax.block_until_ready(feats)

    expected_c = WIDTH * 8 * EXPANSION
    assert feats.shape == (B, expected_c), feats.shape
    assert bool(jnp.isfinite(feats).all())
    print("KERNEL_OK")
</pallas_src>

<mosaic_0001>
module attributes {stable_mosaic.version = 11 : i64} {
  func.func @_mm_bn_kernel(%arg0: i32, %arg1: memref<896x147xbf16, #tpu.memory_space<vmem>>, %arg2: memref<147x8xbf16, #tpu.memory_space<vmem>>, %arg3: memref<1x8xf32, #tpu.memory_space<vmem>>, %arg4: memref<1x8xf32, #tpu.memory_space<vmem>>, %arg5: memref<896x8xbf16, #tpu.memory_space<vmem>>) attributes {dimension_semantics = [#tpu.dimension_semantics<parallel>], iteration_bounds = array<i64: 28>, scalar_prefetch = 0 : i64, scratch_operands = 0 : i64, tpu.core_type = #tpu.core_type<tc>, window_params = [{transform_indices = @transform_0, window_bounds = array<i64: 896, 147>}, {pipeline_mode = #tpu.pipeline_mode<synchronous>, transform_indices = @transform_1, window_bounds = array<i64: 147, 8>}, {pipeline_mode = #tpu.pipeline_mode<synchronous>, transform_indices = @transform_2, window_bounds = array<i64: 1, 8>}, {pipeline_mode = #tpu.pipeline_mode<synchronous>, transform_indices = @transform_3, window_bounds = array<i64: 1, 8>}, {transform_indices = @transform_4, window_bounds = array<i64: 896, 8>}]} {
    %c0 = arith.constant 0 : index
    %c0_0 = arith.constant 0 : index
    %0 = vector.load %arg1[%c0, %c0_0] : memref<896x147xbf16, #tpu.memory_space<vmem>>, vector<896x147xbf16>
    %c0_1 = arith.constant 0 : index
    %c0_2 = arith.constant 0 : index
    %1 = vector.load %arg2[%c0_1, %c0_2] : memref<147x8xbf16, #tpu.memory_space<vmem>>, vector<147x8xbf16>
    %cst = arith.constant dense<0.000000e+00> : vector<896x8xf32>
    %2 = tpu.matmul %0, %1, %cst {dimension_numbers = #tpu.dot_dimension_numbers<[1], [0], [0], [1], [0, 0, 1, 1], [], []>} : vector<896x147xbf16>, vector<147x8xbf16>, vector<896x8xf32> -> vector<896x8xf32>
    %c0_3 = arith.constant 0 : index
    %c0_4 = arith.constant 0 : index
    %3 = vector.load %arg3[%c0_3, %c0_4] : memref<1x8xf32, #tpu.memory_space<vmem>>, vector<1x8xf32>
    %4 = vector.broadcast %3 : vector<1x8xf32> to vector<896x8xf32>
    %5 = arith.mulf %2, %4 : vector<896x8xf32>
    %c0_5 = arith.constant 0 : index
    %c0_6 = arith.constant 0 : index
    %6 = vector.load %arg4[%c0_5, %c0_6] : memref<1x8xf32, #tpu.memory_space<vmem>>, vector<1x8xf32>
    %7 = vector.broadcast %6 : vector<1x8xf32> to vector<896x8xf32>
    %8 = arith.addf %5, %7 : vector<896x8xf32>
    %cst_7 = arith.constant 0.000000e+00 : f32
    %9 = vector.broadcast %cst_7 : f32 to vector<896x8xf32>
    %10 = arith.maximumf %8, %9 : vector<896x8xf32>
    %11 = arith.truncf %10 : vector<896x8xf32> to vector<896x8xbf16>
    %c0_8 = arith.constant 0 : index
    %c0_9 = arith.constant 0 : index
    %12 = vector.load %arg5[%c0_8, %c0_9] : memref<896x8xbf16, #tpu.memory_space<vmem>>, vector<896x8xbf16>
    tpu.vector_store %arg5[%c0_8, %c0_9], %11 {strides = array<i32>} : memref<896x8xbf16, #tpu.memory_space<vmem>>, vector<896x8xbf16>,
    return
  }
  func.func @transform_0(%arg0: i32) -> (i32, i32) {
    %c0_i32 = arith.constant 0 : i32
    %c0_i32_0 = arith.constant 0 : i32
    return %arg0, %c0_i32 : i32, i32
  }
  func.func @transform_1(%arg0: i32) -> (i32, i32) {
    %c0_i32 = arith.constant 0 : i32
    %c0_i32_0 = arith.constant 0 : i32
    %c0_i32_1 = arith.constant 0 : i32
    return %c0_i32, %c0_i32_0 : i32, i32
  }
  func.func @transform_2(%arg0: i32) -> (i32, i32) {
    %c0_i32 = arith.constant 0 : i32
    %c0_i32_0 = arith.constant 0 : i32
    %c0_i32_1 = arith.constant 0 : i32
    return %c0_i32, %c0_i32_0 : i32, i32
  }
  func.func @transform_3(%arg0: i32) -> (i32, i32) {
    %c0_i32 = arith.constant 0 : i32
    %c0_i32_0 = arith.constant 0 : i32
    %c0_i32_1 = arith.constant 0 : i32
    return %c0_i32, %c0_i32_0 : i32, i32
  }
  func.func @transform_4(%arg0: i32) -> (i32, i32) {
    %c0_i32 = arith.constant 0 : i32
    %c0_i32_0 = arith.constant 0 : i32
    return %arg0, %c0_i32 : i32, i32
  }
}

</mosaic_0001>

<llo_original>
// kernel: conv_im2col_bn.1
$region0: #{conv_im2col_bn.1}
  #allocation0 [shape = 'u32[]', space=smem, size = 0x4, offset = 0x4, fixed_abs, tag = 'smem constant byte address 0x4 - core index']
  #allocation1 [shape = 'u32[72,128]{1,0:T(1,128)}', space=vmem, size = 0x9000, scoped, tag = 'internal scratch']
  %s0 = inlined_call_operand.vmem [shape: bf16[25088,147], index: 0, kind: input, shape index: {}]
  %s1 = inlined_call_operand.vmem [shape: bf16[147,8], index: 1, kind: input, shape index: {}]
  %s2 = inlined_call_operand.vmem [shape: f32[1,8], index: 2, kind: input, shape index: {}]
  %s3 = inlined_call_operand.vmem [shape: f32[1,8], index: 3, kind: input, shape index: {}]
  %s4 = inlined_call_operand.vmem [shape: bf16[25088,8], index: 4, kind: output, shape index: {}]
  %s5 = sld [smem:[#allocation0]]
  $region49: #{conv_im2col_bn.1} parent=0
    _
  %s7 = ssub.s32 1, %s5
  %s8 = scalar_select 0, %s7, %s5
  loop: start=0, step=1, limit=30
  $region2: #{conv_im2col_bn.1} parent=0 // loop_pre_header
    _
  $region3: #{conv_im2col_bn.1} parent=0 // loop_header
    %s10 = sphi 0, %s14
    %p11 = scmp.ge.s32.totalorder %s10, 30
    %s20 = sphi 0, %s22
    %s23 = sphi 0, %s20
    %s24 = sphi 0, %s23
    %s40 = sphi 0, %s24
    %s44 = sphi 0, %s44
    %s46 = sphi 0, %s44
    %s47 = sphi 0, %s46
    %s61 = sphi 0, %s47
    %s65 = sphi 0, %s65
    %s67 = sphi 0, %s65
    %s68 = sphi 0, %s67
    %s82 = sphi 0, %s68
    %s86 = sphi 0, %s86
    %s88 = sphi 0, %s86
    %s89 = sphi 0, %s88
    %s103 = sphi 0, %s89
    %s109 = sphi 0, %s111
    %s112 = sphi 0, %s109
    %s113 = sphi 0, %s112
    %s129 = sphi 0, %s113
  $region4: #{conv_im2col_bn.1} parent=0 // loop_header_branch
    %13 = sbr.rel (%p11) target = $region8
  $region5: #{conv_im2col_bn.1} parent=0 // loop_body
    %s15 = ssub.s32 %s10, 1
    %s16 = ssub.s32 %s10, 2
    %s17 = sadd.s32 %s10, 1
    %s18 = ssub.s32 %s10, %s17
    %p19 = scmp.eq.s32.totalorder %s18, 0
    %s21 = sadd.s32 %s20, 1
    %s22 = scalar_select %p19, %s20, %s21
    %p25 = pneg %p19
    %p26 = scmp.eq.s32.totalorder %s10, 27
    %p27 = por %p25, %p26
    %p28 = scmp.ne.s32.totalorder %s20, %s23
    %p29 = scmp.eq.s32.totalorder %s10, 0
    %p30 = por %p28, %p29
    %p31 = scmp.ne.s32.totalorder %s20, %s23
    %p32 = scmp.eq.s32.totalorder %s15, 27
    %p33 = por %p31, %p32
    %p34 = scmp.ne.s32.totalorder %s23, %s24
    %p35 = scmp.eq.s32.totalorder %s15, 0
    %p36 = por %p34, %p35
    %p37 = scmp.ne.s32.totalorder %s23, %s24
    %p38 = scmp.eq.s32.totalorder %s16, 27
    %p39 = por %p37, %p38
    %p41 = scmp.ne.s32.totalorder %s24, %s40
    %p42 = scmp.eq.s32.totalorder %s16, 0
    %p43 = por %p41, %p42
    %s45 = sadd.s32 %s44, 1
    %p48 = scmp.eq.s32.totalorder %s10, 27
    %p49 = scmp.ne.s32.totalorder %s44, %s46
    %p50 = scmp.eq.s32.totalorder %s10, 0
    %p51 = por %p49, %p50
    %p52 = scmp.ne.s32.totalorder %s44, %s46
    %p53 = scmp.eq.s32.totalorder %s15, 27
    %p54 = por %p52, %p53
    %p55 = scmp.ne.s32.totalorder %s46, %s47
    %p56 = scmp.eq.s32.totalorder %s15, 0
    %p57 = por %p55, %p56
    %p58 = scmp.ne.s32.totalorder %s46, %s47
    %p59 = scmp.eq.s32.totalorder %s16, 27
    %p60 = por %p58, %p59
    %p62 = scmp.ne.s32.totalorder %s47, %s61
    %p63 = scmp.eq.s32.totalorder %s16, 0
    %p64 = por %p62, %p63
    %s66 = sadd.s32 %s65, 1
    %p69 = scmp.eq.s32.totalorder %s10, 27
    %p70 = scmp.ne.s32.totalorder %s65, %s67
    %p71 = scmp.eq.s32.totalorder %s10, 0
    %p72 = por %p70, %p71
    %p73 = scmp.ne.s32.totalorder %s65, %s67
    %p74 = scmp.eq.s32.totalorder %s15, 27
    %p75 = por %p73, %p74
    %p76 = scmp.ne.s32.totalorder %s67, %s68
    %p77 = scmp.eq.s32.totalorder %s15, 0
    %p78 = por %p76, %p77
    %p79 = scmp.ne.s32.totalorder %s67, %s68
    %p80 = scmp.eq.s32.totalorder %s16, 27
    %p81 = por %p79, %p80
    %p83 = scmp.ne.s32.totalorder %s68, %s82
    %p84 = scmp.eq.s32.totalorder %s16, 0
    %p85 = por %p83, %p84
    %s87 = sadd.s32 %s86, 1
    %p90 = scmp.eq.s32.totalorder %s10, 27
    %p91 = scmp.ne.s32.totalorder %s86, %s88
    %p92 = scmp.eq.s32.totalorder %s10, 0
    %p93 = por %p91, %p92
    %p94 = scmp.ne.s32.totalorder %s86, %s88
    %p95 = scmp.eq.s32.totalorder %s15, 27
    %p96 = por %p94, %p95
    %p97 = scmp.ne.s32.totalorder %s88, %s89
    %p98 = scmp.eq.s32.totalorder %s15, 0
    %p99 = por %p97, %p98
    %p100 = scmp.ne.s32.totalorder %s88, %s89
    %p101 = scmp.eq.s32.totalorder %s16, 27
    %p102 = por %p100, %p101
    %p104 = scmp.ne.s32.totalorder %s89, %s103
    %p105 = scmp.eq.s32.totalorder %s16, 0
    %p106 = por %p104, %p105
    %s107 = ssub.s32 %s10, %s17
    %p108 = scmp.eq.s32.totalorder %s107, 0
    %s110 = sadd.s32 %s109, 1
    %s111 = scalar_select %p108, %s109, %s110
    %p114 = pneg %p108
    %p115 = scmp.eq.s32.totalorder %s10, 27
    %p116 = por %p114, %p115
    %p117 = scmp.ne.s32.totalorder %s109, %s112
    %p118 = scmp.eq.s32.totalorder %s10, 0
    %p119 = por %p117, %p118
    %p120 = scmp.ne.s32.totalorder %s109, %s112
    %p121 = scmp.eq.s32.totalorder %s15, 27
    %p122 = por %p120, %p121
    %p123 = scmp.ne.s32.totalorder %s112, %s113
    %p124 = scmp.eq.s32.totalorder %s15, 0
    %p125 = por %p123, %p124
    %p126 = scmp.ne.s32.totalorder %s112, %s113
    %p127 = scmp.eq.s32.totalorder %s16, 27
    %p128 = por %p126, %p127
    %p130 = scmp.ne.s32.totalorder %s113, %s129
    %p131 = scmp.eq.s32.totalorder %s16, 0
    %p132 = por %p130, %p131
    %p133 = scmp.le.s32.totalorder 1, %s10
    %p134 = scmp.lt.s32.totalorder %s10, 29
    %p135 = pnand %p133, %p134
    %p136 = pneg %p135
    // Predicated region
    $region9: #{conv_im2col_bn.1} parent=5 // pred_check
      _
    $region10: #{conv_im2col_bn.1} parent=5 // pred_check_branch
      %138 = sbr.rel (%p135) target = $region12
    $region11: #{conv_im2col_bn.1} parent=5 // pred_region
      %s139 = ssub.s32 %s10, 1
      // Predicated region
      $region13: #{conv_im2col_bn.1} parent=11 // pred_check
        %p140 = pneg %p57
      $region14: #{conv_im2col_bn.1} parent=11 // pred_check_branch
        %142 = sbr.rel (%p140) target = $region16
      $region15: #{conv_im2col_bn.1} parent=11 // pred_region
        _
      $region16: #{conv_im2col_bn.1} parent=11 // pred_fallthru
        _
      // Predicated region
      $region17: #{conv_im2col_bn.1} parent=11 // pred_check
        %p143 = pneg %p78
      $region18: #{conv_im2col_bn.1} parent=11 // pred_check_branch
        %145 = sbr.rel (%p143) target = $region20
      $region19: #{conv_im2col_bn.1} parent=11 // pred_region
        _
      $region20: #{conv_im2col_bn.1} parent=11 // pred_fallthru
        _
      // Predicated region
      $region21: #{conv_im2col_bn.1} parent=11 // pred_check
        %p146 = pneg %p99
      $region22: #{conv_im2col_bn.1} parent=11 // pred_check_branch
        %148 = sbr.rel (%p146) target = $region24
      $region23: #{conv_im2col_bn.1} parent=11 // pred_region
        _
      $region24: #{conv_im2col_bn.1} parent=11 // pred_fallthru
        _
    $region12: #{conv_im2col_bn.1} parent=5 // pred_fallthru
      _
    %p149 = scmp.lt.s32.totalorder %s10, 28
    // Predicated region
    $region25: #{conv_im2col_bn.1} parent=5 // pred_check
      %p150 = pneg %p149
    $region26: #{conv_im2col_bn.1} parent=5 // pred_check_branch
      %152 = sbr.rel (%p150) target = $region28
    $region27: #{conv_im2col_bn.1} parent=5 // pred_region
      // Predicated region
      $region29: #{conv_im2col_bn.1} parent=27 // pred_check
        %p153 = pneg %p30
      $region30: #{conv_im2col_bn.1} parent=27 // pred_check_branch
        %155 = sbr.rel (%p153) target = $region32
      $region31: #{conv_im2col_bn.1} parent=27 // pred_region
        %s156 = smul.u32 112, %s10
        %p157 = scmp.lt.s32.totalorder %s156, 3135
        %s158 = scalar_select %p157, %s156, 3135
        %s159 = smul.addr %s158, 2
        %s160 = smul.addr %s159, 4
        %s161 = scalar_lea.vmem %s0, %s160
        %s162 = smul.u32 112, %s10
      $region32: #{conv_im2col_bn.1} parent=27 // pred_fallthru
        _
    $region28: #{conv_im2col_bn.1} parent=5 // pred_fallthru
      _
    %p163 = scmp.le.s32.totalorder 1, %s10
    %p164 = scmp.lt.s32.totalorder %s10, 29
    %p165 = pnand %p163, %p164
    %p166 = pneg %p165
    // Predicated region
    $region33: #{conv_im2col_bn.1} parent=5 // pred_check
      _
    $region34: #{conv_im2col_bn.1} parent=5 // pred_check_branch
      %168 = sbr.rel (%p165) target = $region36
    $region35: #{conv_im2col_bn.1} parent=5 // pred_region
      %s169 = ssub.s32 %s10, 1
      %s170 = smul.u32 112, %s15
      %p171 = scmp.lt.s32.totalorder %s170, 3135
      %s172 = scalar_select %p171, %s170, 3135
      %s173 = smul.addr %s172, 2
      %s174 = smul.addr %s173, 4
      %s175 = scalar_lea.vmem %s0, %s174
      %p176 = pneg %p36
      %p177 = pneg %p33
      %p178 = pneg %p57
      %p179 = pneg %p54
      %p180 = pneg %p78
      %p181 = pneg %p75
      %p182 = pneg %p99
      %p183 = pneg %p96
      %p184 = pneg %p125
      %p185 = pneg %p122
      %s186 = smul.u32 112, %s15
      %p187 = scmp.lt.s32.totalorder %s186, 3135
      %s188 = scalar_select %p187, %s186, 3135
      %s189 = smul.addr %s188, 4
      %s190 = scalar_lea.vmem %s4, %s189
      %s191 = smul.u32 112, %s15
      %p192 = scmp.lt.s32.totalorder %s191, 3135
      %s193 = scalar_select %p192, %s191, 3135
      %s194 = smul.addr %s193, 2
      %s195 = smul.addr %s194, 4
      %s196 = scalar_lea.vmem %s0, %s195
      %s197 = smul.u32 112, %s15
      %s198 = smul.u32 112, %s15
      %p199 = scmp.lt.s32.totalorder %s198, 3135
      %s200 = scalar_select %p199, %s198, 3135
      %s201 = smul.addr %s200, 4
      %s202 = scalar_lea.vmem %s4, %s201
      %s203 = smul.u32 112, %s15
      %v205 = vld [vmem:[%s196] sm:$0xff]
      %v206 = vld [vmem:[%s196 + $0x8] sm:$0xff]
      %v207 = vld [vmem:[%s196 + $0x10] sm:$0xff]
      %v208 = vld [vmem:[%s196 + $0x18] sm:$0xff]
      %v209 = vld [vmem:[%s196 + $0x20] sm:$0xff]
      %v210 = vld [vmem:[%s196 + $0x28] sm:$0xff]
      %v211 = vld [vmem:[%s196 + $0x30] sm:$0xff]
      %v212 = vld [vmem:[%s196 + $0x38] sm:$0xff]
      %v213 = vld [vmem:[%s196 + $0x40] sm:$0xff]
      %v214 = vld [vmem:[%s196 + $0x48] sm:$0xff]
      %v215 = vld [vmem:[%s196 + $0x50] sm:$0xff]
      %v216 = vld [vmem:[%s196 + $0x58] sm:$0xff]
      %v217 = vld [vmem:[%s196 + $0x60] sm:$0xff]
      %v218 = vld [vmem:[%s196 + $0x68] sm:$0xff]
      %v219 = vld [vmem:[%s196 + $0x70] sm:$0xff]
      %v220 = vld [vmem:[%s196 + $0x78] sm:$0xff]
      %v221 = vld [vmem:[%s196 + $0x80] sm:$0xff]
      %v222 = vld [vmem:[%s196 + $0x88] sm:$0xff]
      %v223 = vld [vmem:[%s196 + $0x90] sm:$0xff]
      %v224 = vld [vmem:[%s196 + $0x98] sm:$0xff]
      %v225 = vld [vmem:[%s196 + $0xa0] sm:$0xff]
      %v226 = vld [vmem:[%s196 + $0xa8] sm:$0xff]
      %v227 = vld [vmem:[%s196 + $0xb0] sm:$0xff]
      %v228 = vld [vmem:[%s196 + $0xb8] sm:$0xff]
      %v229 = vld [vmem:[%s196 + $0xc0] sm:$0xff]
      %v230 = vld [vmem:[%s196 + $0xc8] sm:$0xff]
      %v231 = vld [vmem:[%s196 + $0xd0] sm:$0xff]
      %v232 = vld [vmem:[%s196 + $0xd8] sm:$0xff]
      %v233 = vld [vmem:[%s196 + $0xe0] sm:$0xff]
      %v234 = vld [vmem:[%s196 + $0xe8] sm:$0xff]
      %v235 = vld [vmem:[%s196 + $0xf0] sm:$0xff]
      %v236 = vld [vmem:[%s196 + $0xf8] sm:$0xff]
      %v237 = vld [vmem:[%s196 + $0x100] sm:$0xff]
      %v238 = vld [vmem:[%s196 + $0x108] sm:$0xff]
      %v239 = vld [vmem:[%s196 + $0x110] sm:$0xff]
      %v240 = vld [vmem:[%s196 + $0x118] sm:$0xff]
      %v241 = vld [vmem:[%s196 + $0x120] sm:$0xff]
      %v242 = vld [vmem:[%s196 + $0x128] sm:$0xff]
      %v243 = vld [vmem:[%s196 + $0x130] sm:$0xff]
      %v244 = vld [vmem:[%s196 + $0x138] sm:$0xff]
      %v245 = vld [vmem:[%s196 + $0x140] sm:$0xff]
      %v246 = vld [vmem:[%s196 + $0x148] sm:$0xff]
      %v247 = vld [vmem:[%s196 + $0x150] sm:$0xff]
      %v248 = vld [vmem:[%s196 + $0x158] sm:$0xff]
      %v249 = vld [vmem:[%s196 + $0x160] sm:$0xff]
      %v250 = vld [vmem:[%s196 + $0x168] sm:$0xff]
      %v251 = vld [vmem:[%s196 + $0x170] sm:$0xff]
      %v252 = vld [vmem:[%s196 + $0x178] sm:$0xff]
      %v253 = vld [vmem:[%s196 + $0x180] sm:$0xff]
      %v254 = vld [vmem:[%s196 + $0x188] sm:$0xff]
      %v255 = vld [vmem:[%s196 + $0x190] sm:$0xff]
      %v256 = vld [vmem:[%s196 + $0x198] sm:$0xff]
      %v257 = vld [vmem:[%s196 + $0x1a0] sm:$0xff]
      %v258 = vld [vmem:[%s196 + $0x1a8] sm:$0xff]
      %v259 = vld [vmem:[%s196 + $0x1b0] sm:$0xff]
      %v260 = vld [vmem:[%s196 + $0x1b8] sm:$0xff]
      %v261 = vld [vmem:[%s196 + $0x1c0] sm:$0xff]
      %v262 = vld [vmem:[%s196 + $0x1c8] sm:$0xff]
      %v263 = vld [vmem:[%s196 + $0x1d0] sm:$0xff]
      %v264 = vld [vmem:[%s196 + $0x1d8] sm:$0xff]
      %v265 = vld [vmem:[%s196 + $0x1e0] sm:$0xff]
      %v266 = vld [vmem:[%s196 + $0x1e8] sm:$0xff]
      %v267 = vld [vmem:[%s196 + $0x1f0] sm:$0xff]
      %v268 = vld [vmem:[%s196 + $0x1f8] sm:$0xff]
      %v269 = vld [vmem:[%s196 + $0x200] sm:$0xff]
      %v270 = vld [vmem:[%s196 + $0x208] sm:$0xff]
      %v271 = vld [vmem:[%s196 + $0x210] sm:$0xff]
      %v272 = vld [vmem:[%s196 + $0x218] sm:$0xff]
      %v273 = vld [vmem:[%s196 + $0x220] sm:$0xff]
      %v274 = vld [vmem:[%s196 + $0x228] sm:$0xff]
      %v275 = vld [vmem:[%s196 + $0x230] sm:$0xff]
      %v276 = vld [vmem:[%s196 + $0x238] sm:$0xff]
      %v277 = vld [vmem:[%s196 + $0x240] sm:$0xff]
      %v278 = vld [vmem:[%s196 + $0x248] sm:$0xff]
      %v279 = vld [vmem:[%s196 + $0x250] sm:$0xff]
      %v280 = vld [vmem:[%s196 + $0x258] sm:$0xff]
      %v281 = vld [vmem:[%s196 + $0x260] sm:$0xff]
      %v282 = vld [vmem:[%s196 + $0x268] sm:$0xff]
      %v283 = vld [vmem:[%s196 + $0x270] sm:$0xff]
      %v284 = vld [vmem:[%s196 + $0x278] sm:$0xff]
      %v285 = vld [vmem:[%s196 + $0x280] sm:$0xff]
      %v286 = vld [vmem:[%s196 + $0x288] sm:$0xff]
      %v287 = vld [vmem:[%s196 + $0x290] sm:$0xff]
      %v288 = vld [vmem:[%s196 + $0x298] sm:$0xff]
      %v289 = vld [vmem:[%s196 + $0x2a0] sm:$0xff]
      %v290 = vld [vmem:[%s196 + $0x2a8] sm:$0xff]
      %v291 = vld [vmem:[%s196 + $0x2b0] sm:$0xff]
      %v292 = vld [vmem:[%s196 + $0x2b8] sm:$0xff]
      %v293 = vld [vmem:[%s196 + $0x2c0] sm:$0xff]
      %v294 = vld [vmem:[%s196 + $0x2c8] sm:$0xff]
      %v295 = vld [vmem:[%s196 + $0x2d0] sm:$0xff]
      %v296 = vld [vmem:[%s196 + $0x2d8] sm:$0xff]
      %v297 = vld [vmem:[%s196 + $0x2e0] sm:$0xff]
      %v298 = vld [vmem:[%s196 + $0x2e8] sm:$0xff]
      %v299 = vld [vmem:[%s196 + $0x2f0] sm:$0xff]
      %v300 = vld [vmem:[%s196 + $0x2f8] sm:$0xff]
      %v301 = vld [vmem:[%s196 + $0x300] sm:$0xff]
      %v302 = vld [vmem:[%s196 + $0x308] sm:$0xff]
      %v303 = vld [vmem:[%s196 + $0x310] sm:$0xff]
      %v304 = vld [vmem:[%s196 + $0x318] sm:$0xff]
      %v305 = vld [vmem:[%s196 + $0x320] sm:$0xff]
      %v306 = vld [vmem:[%s196 + $0x328] sm:$0xff]
      %v307 = vld [vmem:[%s196 + $0x330] sm:$0xff]
      %v308 = vld [vmem:[%s196 + $0x338] sm:$0xff]
      %v309 = vld [vmem:[%s196 + $0x340] sm:$0xff]
      %v310 = vld [vmem:[%s196 + $0x348] sm:$0xff]
      %v311 = vld [vmem:[%s196 + $0x350] sm:$0xff]
      %v312 = vld [vmem:[%s196 + $0x358] sm:$0xff]
      %v313 = vld [vmem:[%s196 + $0x360] sm:$0xff]
      %v314 = vld [vmem:[%s196 + $0x368] sm:$0xff]
      %v315 = vld [vmem:[%s196 + $0x370] sm:$0xff]
      %v316 = vld [vmem:[%s196 + $0x378] sm:$0xff]
      %v317 = vld [vmem:[%s1] sm:$0xf]
      %v318 = vld [vmem:[%s1 + $0x4] sm:$0xf]
      %v319 = vld [vmem:[%s1 + $0x8] sm:$0xf]
      %v320 = vld [vmem:[%s1 + $0xc] sm:$0xf]
      %v321 = vld [vmem:[%s1 + $0x10] sm:$0xf]
      %v322 = vld [vmem:[%s1 + $0x14] sm:$0xf]
      %v323 = vld [vmem:[%s1 + $0x18] sm:$0xf]
      %v324 = vld [vmem:[%s1 + $0x1c] sm:$0xf]
      %v325 = vld [vmem:[%s1 + $0x20] sm:$0xf]
      %v326 = vld [vmem:[%s1 + $0x24] sm:$0xf]
      %v327 = vld [vmem:[%s1 + $0x28] sm:$0xf]
      %v328 = vld [vmem:[%s1 + $0x2c] sm:$0xf]
      %v329 = vld [vmem:[%s1 + $0x30] sm:$0xf]
      %v330 = vld [vmem:[%s1 + $0x34] sm:$0xf]
      %v331 = vld [vmem:[%s1 + $0x38] sm:$0xf]
      %v332 = vld [vmem:[%s1 + $0x3c] sm:$0xf]
      %v333 = vld [vmem:[%s1 + $0x40] sm:$0xf]
      %v334 = vld [vmem:[%s1 + $0x44] sm:$0xf]
      %v335 = vld [vmem:[%s1 + $0x48] sm:$0x3]
      %v448 = vunpack.c.l.b16 %v205
      %v449 = vunpack.c.h.b16 %v205
      %v450 = vunpack.c.l.b16 %v206
      %v451 = vunpack.c.h.b16 %v206
      %v452 = vunpack.c.l.b16 %v207
      %v453 = vunpack.c.h.b16 %v207
      %v454 = vunpack.c.l.b16 %v208
      %v455 = vunpack.c.h.b16 %v208
      %v456 = vunpack.c.l.b16 %v209
      %v457 = vunpack.c.h.b16 %v209
      %v458 = vunpack.c.l.b16 %v210
      %v459 = vunpack.c.h.b16 %v210
      %v460 = vunpack.c.l.b16 %v211
      %v461 = vunpack.c.h.b16 %v211
      %v462 = vunpack.c.l.b16 %v212
      %v463 = vunpack.c.h.b16 %v212
      %v464 = vunpack.c.l.b16 %v213
      %v465 = vunpack.c.h.b16 %v213
      %v466 = vunpack.c.l.b16 %v214
      %v467 = vunpack.c.h.b16 %v214
      %v468 = vunpack.c.l.b16 %v215
      %v469 = vunpack.c.h.b16 %v215
      %v470 = vunpack.c.l.b16 %v216
      %v471 = vunpack.c.h.b16 %v216
      %v472 = vunpack.c.l.b16 %v217
      %v473 = vunpack.c.h.b16 %v217
      %v474 = vunpack.c.l.b16 %v218
      %v475 = vunpack.c.h.b16 %v218
      %v476 = vunpack.c.l.b16 %v219
      %v477 = vunpack.c.h.b16 %v219
      %v478 = vunpack.c.l.b16 %v220
      %v479 = vunpack.c.h.b16 %v220
      %v480 = vunpack.c.l.b16 %v221
      %v481 = vunpack.c.h.b16 %v221
      %v482 = vunpack.c.l.b16 %v222
      %v483 = vunpack.c.h.b16 %v222
      %v484 = vunpack.c.l.b16 %v223
      %v485 = vunpack.c.h.b16 %v223
      %v486 = vunpack.c.l.b16 %v224
      %v487 = vunpack.c.h.b16 %v224
      %v488 = vunpack.c.l.b16 %v225
      %v489 = vunpack.c.h.b16 %v225
      %v490 = vunpack.c.l.b16 %v226
      %v491 = vunpack.c.h.b16 %v226
      %v492 = vunpack.c.l.b16 %v227
      %v493 = vunpack.c.h.b16 %v227
      %v494 = vunpack.c.l.b16 %v228
      %v495 = vunpack.c.h.b16 %v228
      %v496 = vunpack.c.l.b16 %v229
      %v497 = vunpack.c.h.b16 %v229
      %v498 = vunpack.c.l.b16 %v230
      %v499 = vunpack.c.h.b16 %v230
      %v500 = vunpack.c.l.b16 %v231
      %v501 = vunpack.c.h.b16 %v231
      %v502 = vunpack.c.l.b16 %v232
      %v503 = vunpack.c.h.b16 %v232
      %v504 = vunpack.c.l.b16 %v233
      %v505 = vunpack.c.h.b16 %v233
      %v506 = vunpack.c.l.b16 %v234
      %v507 = vunpack.c.h.b16 %v234
      %v508 = vunpack.c.l.b16 %v235
      %v509 = vunpack.c.h.b16 %v235
      %v510 = vunpack.c.l.b16 %v236
      %v511 = vunpack.c.h.b16 %v236
      %v512 = vunpack.c.l.b16 %v237
      %v513 = vunpack.c.h.b16 %v237
      %v514 = vunpack.c.l.b16 %v238
      %v515 = vunpack.c.h.b16 %v238
      %v516 = vunpack.c.l.b16 %v239
      %v517 = vunpack.c.h.b16 %v239
      %v518 = vunpack.c.l.b16 %v240
      %v519 = vunpack.c.h.b16 %v240
      %v520 = vunpack.c.l.b16 %v241
      %v521 = vunpack.c.h.b16 %v241
      %v522 = vunpack.c.l.b16 %v242
      %v523 = vunpack.c.h.b16 %v242
      %v524 = vunpack.c.l.b16 %v243
      %v525 = vunpack.c.h.b16 %v243
      %v526 = vunpack.c.l.b16 %v244
      %v527 = vunpack.c.h.b16 %v244
      %v528 = vunpack.c.l.b16 %v245
      %v529 = vunpack.c.h.b16 %v245
      %v530 = vunpack.c.l.b16 %v246
      %v531 = vunpack.c.h.b16 %v246
      %v532 = vunpack.c.l.b16 %v247
      %v533 = vunpack.c.h.b16 %v247
      %v534 = vunpack.c.l.b16 %v248
      %v535 = vunpack.c.h.b16 %v248
      %v536 = vunpack.c.l.b16 %v249
      %v537 = vunpack.c.h.b16 %v249
      %v538 = vunpack.c.l.b16 %v250
      %v539 = vunpack.c.h.b16 %v250
      %v540 = vunpack.c.l.b16 %v251
      %v541 = vunpack.c.h.b16 %v251
      %v542 = vunpack.c.l.b16 %v252
      %v543 = vunpack.c.h.b16 %v252
      %v544 = vunpack.c.l.b16 %v253
      %v545 = vunpack.c.h.b16 %v253
      %v546 = vunpack.c.l.b16 %v254
      %v547 = vunpack.c.h.b16 %v254
      %v548 = vunpack.c.l.b16 %v255
      %v549 = vunpack.c.h.b16 %v255
      %v550 = vunpack.c.l.b16 %v256
      %v551 = vunpack.c.h.b16 %v256
      %v552 = vunpack.c.l.b16 %v257
      %v553 = vunpack.c.h.b16 %v257
      %v554 = vunpack.c.l.b16 %v258
      %v555 = vunpack.c.h.b16 %v258
      %v556 = vunpack.c.l.b16 %v259
      %v557 = vunpack.c.h.b16 %v259
      %v558 = vunpack.c.l.b16 %v260
      %v559 = vunpack.c.h.b16 %v260
      %v560 = vunpack.c.l.b16 %v261
      %v561 = vunpack.c.h.b16 %v261
      %v562 = vunpack.c.l.b16 %v262
      %v563 = vunpack.c.h.b16 %v262
      %v564 = vunpack.c.l.b16 %v263
      %v565 = vunpack.c.h.b16 %v263
      %v566 = vunpack.c.l.b16 %v264
      %v567 = vunpack.c.h.b16 %v264
      %v568 = vunpack.c.l.b16 %v265
      %v569 = vunpack.c.h.b16 %v265
      %v570 = vunpack.c.l.b16 %v266
      %v571 = vunpack.c.h.b16 %v266
      %v572 = vunpack.c.l.b16 %v267
      %v573 = vunpack.c.h.b16 %v267
      %v574 = vunpack.c.l.b16 %v268
      %v575 = vunpack.c.h.b16 %v268
      %v576 = vunpack.c.l.b16 %v269
      %v577 = vunpack.c.h.b16 %v269
      %v578 = vunpack.c.l.b16 %v270
      %v579 = vunpack.c.h.b16 %v270
      %v580 = vunpack.c.l.b16 %v271
      %v581 = vunpack.c.h.b16 %v271
      %v582 = vunpack.c.l.b16 %v272
      %v583 = vunpack.c.h.b16 %v272
      %v584 = vunpack.c.l.b16 %v273
      %v585 = vunpack.c.h.b16 %v273
      %v586 = vunpack.c.l.b16 %v274
      %v587 = vunpack.c.h.b16 %v274
      %v588 = vunpack.c.l.b16 %v275
      %v589 = vunpack.c.h.b16 %v275
      %v590 = vunpack.c.l.b16 %v276
      %v591 = vunpack.c.h.b16 %v276
      %v592 = vunpack.c.l.b16 %v277
      %v593 = vunpack.c.h.b16 %v277
      %v594 = vunpack.c.l.b16 %v278
      %v595 = vunpack.c.h.b16 %v278
      %v596 = vunpack.c.l.b16 %v279
      %v597 = vunpack.c.h.b16 %v279
      %v598 = vunpack.c.l.b16 %v280
      %v599 = vunpack.c.h.b16 %v280
      %v600 = vunpack.c.l.b16 %v281
      %v601 = vunpack.c.h.b16 %v281
      %v602 = vunpack.c.l.b16 %v282
      %v603 = vunpack.c.h.b16 %v282
      %v604 = vunpack.c.l.b16 %v283
      %v605 = vunpack.c.h.b16 %v283
      %v606 = vunpack.c.l.b16 %v284
      %v607 = vunpack.c.h.b16 %v284
      %v608 = vunpack.c.l.b16 %v285
      %v609 = vunpack.c.h.b16 %v285
      %v610 = vunpack.c.l.b16 %v286
      %v611 = vunpack.c.h.b16 %v286
      %v612 = vunpack.c.l.b16 %v287
      %v613 = vunpack.c.h.b16 %v287
      %v614 = vunpack.c.l.b16 %v288
      %v615 = vunpack.c.h.b16 %v288
      %v616 = vunpack.c.l.b16 %v289
      %v617 = vunpack.c.h.b16 %v289
      %v618 = vunpack.c.l.b16 %v290
      %v619 = vunpack.c.h.b16 %v290
      %v620 = vunpack.c.l.b16 %v291
      %v621 = vunpack.c.h.b16 %v291
      %v622 = vunpack.c.l.b16 %v292
      %v623 = vunpack.c.h.b16 %v292
      %v624 = vunpack.c.l.b16 %v293
      %v625 = vunpack.c.h.b16 %v293
      %v626 = vunpack.c.l.b16 %v294
      %v627 = vunpack.c.h.b16 %v294
      %v628 = vunpack.c.l.b16 %v295
      %v629 = vunpack.c.h.b16 %v295
      %v630 = vunpack.c.l.b16 %v296
      %v631 = vunpack.c.h.b16 %v296
      %v632 = vunpack.c.l.b16 %v297
      %v633 = vunpack.c.h.b16 %v297
      %v634 = vunpack.c.l.b16 %v298
      %v635 = vunpack.c.h.b16 %v298
      %v636 = vunpack.c.l.b16 %v299
      %v637 = vunpack.c.h.b16 %v299
      %v638 = vunpack.c.l.b16 %v300
      %v639 = vunpack.c.h.b16 %v300
      %v640 = vunpack.c.l.b16 %v301
      %v641 = vunpack.c.h.b16 %v301
      %v642 = vunpack.c.l.b16 %v302
      %v643 = vunpack.c.h.b16 %v302
      %v644 = vunpack.c.l.b16 %v303
      %v645 = vunpack.c.h.b16 %v303
      %v646 = vunpack.c.l.b16 %v304
      %v647 = vunpack.c.h.b16 %v304
      %v648 = vunpack.c.l.b16 %v305
      %v649 = vunpack.c.h.b16 %v305
      %v650 = vunpack.c.l.b16 %v306
      %v651 = vunpack.c.h.b16 %v306
      %v652 = vunpack.c.l.b16 %v307
      %v653 = vunpack.c.h.b16 %v307
      %v654 = vunpack.c.l.b16 %v308
      %v655 = vunpack.c.h.b16 %v308
      %v656 = vunpack.c.l.b16 %v309
      %v657 = vunpack.c.h.b16 %v309
      %v658 = vunpack.c.l.b16 %v310
      %v659 = vunpack.c.h.b16 %v310
      %v660 = vunpack.c.l.b16 %v311
      %v661 = vunpack.c.h.b16 %v311
      %v662 = vunpack.c.l.b16 %v312
      %v663 = vunpack.c.h.b16 %v312
      %v664 = vunpack.c.l.b16 %v313
      %v665 = vunpack.c.h.b16 %v313
      %v666 = vunpack.c.l.b16 %v314
      %v667 = vunpack.c.h.b16 %v314
      %v668 = vunpack.c.l.b16 %v315
      %v669 = vunpack.c.h.b16 %v315
      %v670 = vunpack.c.l.b16 %v316
      %v671 = vunpack.c.h.b16 %v316
      %v672 = vpack.c.b16 %v450, %v448
      %v673 = vpack.c.b16 %v451, %v449
      %v674 = vpack.c.b16 %v454, %v452
      %v675 = vpack.c.b16 %v455, %v453
      %v676 = vpack.c.b16 %v458, %v456
      %v677 = vpack.c.b16 %v459, %v457
      %v678 = vpack.c.b16 %v462, %v460
      %v679 = vpack.c.b16 %v463, %v461
      %v680 = vpack.c.b16 %v466, %v464
      %v681 = vpack.c.b16 %v467, %v465
      %v682 = vpack.c.b16 %v470, %v468
      %v683 = vpack.c.b16 %v471, %v469
      %v684 = vpack.c.b16 %v474, %v472
      %v685 = vpack.c.b16 %v475, %v473
      %v686 = vpack.c.b16 %v478, %v476
      %v687 = vpack.c.b16 %v479, %v477
      %v688 = vpack.c.b16 %v482, %v480
      %v689 = vpack.c.b16 %v483, %v481
      %v690 = vpack.c.b16 %v486, %v484
      %v691 = vpack.c.b16 %v487, %v485
      %v692 = vpack.c.b16 %v490, %v488
      %v693 = vpack.c.b16 %v491, %v489
      %v694 = vpack.c.b16 %v494, %v492
      %v695 = vpack.c.b16 %v495, %v493
      %v696 = vpack.c.b16 %v498, %v496
      %v697 = vpack.c.b16 %v499, %v497
      %v698 = vpack.c.b16 %v502, %v500
      %v699 = vpack.c.b16 %v503, %v501
      %v700 = vpack.c.b16 %v506, %v504
      %v701 = vpack.c.b16 %v507, %v505
      %v702 = vpack.c.b16 %v510, %v508
      %v703 = vpack.c.b16 %v511, %v509
      %v704 = vpack.c.b16 %v514, %v512
      %v705 = vpack.c.b16 %v515, %v513
      %v706 = vpack.c.b16 %v518, %v516
      %v707 = vpack.c.b16 %v519, %v517
      %v708 = vpack.c.b16 %v522, %v520
      %v709 = vpack.c.b16 %v523, %v521
      %v710 = vpack.c.b16 %v526, %v524
      %v711 = vpack.c.b16 %v527, %v525
      %v712 = vpack.c.b16 %v530, %v528
      %v713 = vpack.c.b16 %v531, %v529
      %v714 = vpack.c.b16 %v534, %v532
      %v715 = vpack.c.b16 %v535, %v533
      %v716 = vpack.c.b16 %v538, %v536
      %v717 = vpack.c.b16 %v539, %v537
      %v718 = vpack.c.b16 %v542, %v540
      %v719 = vpack.c.b16 %v543, %v541
      %v720 = vpack.c.b16 %v546, %v544
      %v721 = vpack.c.b16 %v547, %v545
      %v722 = vpack.c.b16 %v550, %v548
      %v723 = vpack.c.b16 %v551, %v549
      %v724 = vpack.c.b16 %v554, %v552
      %v725 = vpack.c.b16 %v555, %v553
      %v726 = vpack.c.b16 %v558, %v556
      %v727 = vpack.c.b16 %v559, %v557
      %v728 = vpack.c.b16 %v562, %v560
      %v729 = vpack.c.b16 %v563, %v561
      %v730 = vpack.c.b16 %v566, %v564
      %v731 = vpack.c.b16 %v567, %v565
      %v732 = vpack.c.b16 %v570, %v568
      %v733 = vpack.c.b16 %v571, %v569
      %v734 = vpack.c.b16 %v574, %v572
      %v735 = vpack.c.b16 %v575, %v573
      %v736 = vpack.c.b16 %v578, %v576
      %v737 = vpack.c.b16 %v579, %v577
      %v738 = vpack.c.b16 %v582, %v580
      %v739 = vpack.c.b16 %v583, %v581
      %v740 = vpack.c.b16 %v586, %v584
      %v741 = vpack.c.b16 %v587, %v585
      %v742 = vpack.c.b16 %v590, %v588
      %v743 = vpack.c.b16 %v591, %v589
      %v744 = vpack.c.b16 %v594, %v592
      %v745 = vpack.c.b16 %v595, %v593
      %v746 = vpack.c.b16 %v598, %v596
      %v747 = vpack.c.b16 %v599, %v597
      %v748 = vpack.c.b16 %v602, %v600
      %v749 = vpack.c.b16 %v603, %v601
      %v750 = vpack.c.b16 %v606, %v604
      %v751 = vpack.c.b16 %v607, %v605
      %v752 = vpack.c.b16 %v610, %v608
      %v753 = vpack.c.b16 %v611, %v609
      %v754 = vpack.c.b16 %v614, %v612
      %v755 = vpack.c.b16 %v615, %v613
      %v756 = vpack.c.b16 %v618, %v616
      %v757 = vpack.c.b16 %v619, %v617
      %v758 = vpack.c.b16 %v622, %v620
      %v759 = vpack.c.b16 %v623, %v621
      %v760 = vpack.c.b16 %v626, %v624
      %v761 = vpack.c.b16 %v627, %v625
      %v762 = vpack.c.b16 %v630, %v628
      %v763 = vpack.c.b16 %v631, %v629
      %v764 = vpack.c.b16 %v634, %v632
      %v765 = vpack.c.b16 %v635, %v633
      %v766 = vpack.c.b16 %v638, %v636
      %v767 = vpack.c.b16 %v639, %v637
      %v768 = vpack.c.b16 %v642, %v640
      %v769 = vpack.c.b16 %v643, %v641
      %v770 = vpack.c.b16 %v646, %v644
      %v771 = vpack.c.b16 %v647, %v645
      %v772 = vpack.c.b16 %v650, %v648
      %v773 = vpack.c.b16 %v651, %v649
      %v774 = vpack.c.b16 %v654, %v652
      %v775 = vpack.c.b16 %v655, %v653
      %v776 = vpack.c.b16 %v658, %v656
      %v777 = vpack.c.b16 %v659, %v657
      %v778 = vpack.c.b16 %v662, %v660
      %v779 = vpack.c.b16 %v663, %v661
      %v780 = vpack.c.b16 %v666, %v664
      %v781 = vpack.c.b16 %v667, %v665
      %v782 = vpack.c.b16 %v670, %v668
      %v783 = vpack.c.b16 %v671, %v669
      %v859 = vunpack.c.l.b16 %v317
      %v860 = vunpack.c.l.b16 %v318
      %v861 = vunpack.c.l.b16 %v319
      %v862 = vunpack.c.l.b16 %v320
      %v863 = vunpack.c.l.b16 %v321
      %v864 = vunpack.c.l.b16 %v322
      %v865 = vunpack.c.l.b16 %v323
      %v866 = vunpack.c.l.b16 %v324
      %v867 = vunpack.c.l.b16 %v325
      %v868 = vunpack.c.l.b16 %v326
      %v869 = vunpack.c.l.b16 %v327
      %v870 = vunpack.c.l.b16 %v328
      %v871 = vunpack.c.l.b16 %v329
      %v872 = vunpack.c.l.b16 %v330
      %v873 = vunpack.c.l.b16 %v331
      %v874 = vunpack.c.l.b16 %v332
      %v875 = vunpack.c.l.b16 %v333
      %v876 = vunpack.c.l.b16 %v334
      %v877 = vunpack.c.l.b16 %v335
      %v878 = vpack.c.b16 %v860, %v859
      %v879 = vpack.c.b16 %v862, %v861
      %v880 = vpack.c.b16 %v864, %v863
      %v881 = vpack.c.b16 %v866, %v865
      %v882 = vpack.c.b16 %v868, %v867
      %v883 = vpack.c.b16 %v870, %v869
      %v884 = vpack.c.b16 %v872, %v871
      %v885 = vpack.c.b16 %v874, %v873
      %v886 = vpack.c.b16 %v876, %v875
      %v887 = vpack.c.b16 %v877, %v877
      %vm897 = vcmask 154624
      %v899 = vsel %vm897, %v673, 0
      %v902 = vsel %vm897, %v675, 0
      %v905 = vsel %vm897, %v677, 0
      %v908 = vsel %vm897, %v679, 0
      %v911 = vsel %vm897, %v681, 0
      %v914 = vsel %vm897, %v683, 0
      %v917 = vsel %vm897, %v685, 0
      %v920 = vsel %vm897, %v687, 0
      %v923 = vsel %vm897, %v689, 0
      %v926 = vsel %vm897, %v691, 0
      %v929 = vsel %vm897, %v693, 0
      %v932 = vsel %vm897, %v695, 0
      %v935 = vsel %vm897, %v697, 0
      %v938 = vsel %vm897, %v699, 0
      %v941 = vsel %vm897, %v701, 0
      %v944 = vsel %vm897, %v703, 0
      %v947 = vsel %vm897, %v705, 0
      %v950 = vsel %vm897, %v707, 0
      %v953 = vsel %vm897, %v709, 0
      %v956 = vsel %vm897, %v711, 0
      %v959 = vsel %vm897, %v713, 0
      %v962 = vsel %vm897, %v715, 0
      %v965 = vsel %vm897, %v717, 0
      %v968 = vsel %vm897, %v719, 0
      %v971 = vsel %vm897, %v721, 0
      %v974 = vsel %vm897, %v723, 0
      %v977 = vsel %vm897, %v725, 0
      %v980 = vsel %vm897, %v727, 0
      %v983 = vsel %vm897, %v729, 0
      %v986 = vsel %vm897, %v731, 0
      %v989 = vsel %vm897, %v733, 0
      %v992 = vsel %vm897, %v735, 0
      %v995 = vsel %vm897, %v737, 0
      %v998 = vsel %vm897, %v739, 0
      %v1001 = vsel %vm897, %v741, 0
      %v1004 = vsel %vm897, %v743, 0
      %v1007 = vsel %vm897, %v745, 0
      %v1010 = vsel %vm897, %v747, 0
      %v1013 = vsel %vm897, %v749, 0
      %v1016 = vsel %vm897, %v751, 0
      %v1019 = vsel %vm897, %v753, 0
      %v1022 = vsel %vm897, %v755, 0
      %v1025 = vsel %vm897, %v757, 0
      %v1028 = vsel %vm897, %v759, 0
      %v1031 = vsel %vm897, %v761, 0
      %v1034 = vsel %vm897, %v763, 0
      %v1037 = vsel %vm897, %v765, 0
      %v1040 = vsel %vm897, %v767, 0
      %v1043 = vsel %vm897, %v769, 0
      %v1046 = vsel %vm897, %v771, 0
      %v1049 = vsel %vm897, %v773, 0
      %v1052 = vsel %vm897, %v775, 0
      %v1055 = vsel %vm897, %v777, 0
      %v1058 = vsel %vm897, %v779, 0
      %v1061 = vsel %vm897, %v781, 0
      %v1064 = vsel %vm897, %v783, 0
      %vm1066 = vcmask 1040384
      %vm1067 = vcmask 1041408
      %v1068 = vsel %vm1066, 4294967295, 65535
      %v1069 = vsel %vm1067, %v1068, 0
      %v1071 = vand.u32 %v887, %v1069
      %1073 = vmatpush.bf16.msra.mxu0 %v885
      %1074 = vmatpush.bf16.msra.mxu0 %v884
      %1075 = vmatpush.bf16.msra.mxu0 %v883
      %1076 = vmatpush.bf16.msra.mxu0 %v882
      %1077 = vmatpush.bf16.msra.mxu0 %v881
      %1078 = vmatpush.bf16.msra.mxu0 %v880
      %1079 = vmatpush.bf16.msra.mxu0 %v879
      %1080 = vmatpush.bf16.msra.mxu0 %v878
      %1081 = vmatmul.bf16.gmra.mxu0 %v672
      %v1082 = vpop.f32.mrf.mxu0
      %v1083 = vadd.f32 0.0, %v1082
      %v1084 = vpop.f32.mrf.mxu0
      %v1085 = vadd.f32 0.0, %v1084
      %1086 = vmatmul.bf16.gmra.mxu0 %v674
      %v1087 = vpop.f32.mrf.mxu0
      %v1088 = vadd.f32 0.0, %v1087
      %v1089 = vpop.f32.mrf.mxu0
      %v1090 = vadd.f32 0.0, %v1089
      %1091 = vmatmul.bf16.gmra.mxu0 %v676
      %v1092 = vpop.f32.mrf.mxu0
      %v1093 = vadd.f32 0.0, %v1092
      %v1094 = vpop.f32.mrf.mxu0
      %v1095 = vadd.f32 0.0, %v1094
      %1096 = vmatmul.bf16.gmra.mxu0 %v678
      %v1097 = vpop.f32.mrf.mxu0
      %v1098 = vadd.f32 0.0, %v1097
      %v1099 = vpop.f32.mrf.mxu0
      %v1100 = vadd.f32 0.0, %v1099
      %1101 = vmatmul.bf16.gmra.mxu0 %v680
      %v1102 = vpop.f32.mrf.mxu0
      %v1103 = vadd.f32 0.0, %v1102
      %v1104 = vpop.f32.mrf.mxu0
      %v1105 = vadd.f32 0.0, %v1104
      %1106 = vmatmul.bf16.gmra.mxu0 %v682
      %v1107 = vpop.f32.mrf.mxu0
      %v1108 = vadd.f32 0.0, %v1107
      %v1109 = vpop.f32.mrf.mxu0
      %v1110 = vadd.f32 0.0, %v1109
      %1111 = vmatmul.bf16.gmra.mxu0 %v684
      %v1112 = vpop.f32.mrf.mxu0
      %v1113 = vadd.f32 0.0, %v1112
      %v1114 = vpop.f32.mrf.mxu0
      %v1115 = vadd.f32 0.0, %v1114
      %1116 = vmatmul.bf16.gmra.mxu0 %v686
      %v1117 = vpop.f32.mrf.mxu0
      %v1118 = vadd.f32 0.0, %v1117
      %v1119 = vpop.f32.mrf.mxu0
      %v1120 = vadd.f32 0.0, %v1119
      %1121 = vmatmul.bf16.gmra.mxu0 %v688
      %v1122 = vpop.f32.mrf.mxu0
      %v1123 = vadd.f32 0.0, %v1122
      %v1124 = vpop.f32.mrf.mxu0
      %v1125 = vadd.f32 0.0, %v1124
      %1126 = vmatmul.bf16.gmra.mxu0 %v690
      %v1127 = vpop.f32.mrf.mxu0
      %v1128 = vadd.f32 0.0, %v1127
      %v1129 = vpop.f32.mrf.mxu0
      %v1130 = vadd.f32 0.0, %v1129
      %1131 = vmatmul.bf16.gmra.mxu0 %v692
      %v1132 = vpop.f32.mrf.mxu0
      %v1133 = vadd.f32 0.0, %v1132
      %v1134 = vpop.f32.mrf.mxu0
      %v1135 = vadd.f32 0.0, %v1134
      %1136 = vmatmul.bf16.gmra.mxu0 %v694
      %v1137 = vpop.f32.mrf.mxu0
      %v1138 = vadd.f32 0.0, %v1137
      %v1139 = vpop.f32.mrf.mxu0
      %v1140 = vadd.f32 0.0, %v1139
      %1141 = vmatmul.bf16.gmra.mxu0 %v696
      %v1142 = vpop.f32.mrf.mxu0
      %v1143 = vadd.f32 0.0, %v1142
      %v1144 = vpop.f32.mrf.mxu0
      %v1145 = vadd.f32 0.0, %v1144
      %1146 = vmatmul.bf16.gmra.mxu0 %v698
      %v1147 = vpop.f32.mrf.mxu0
      %v1148 = vadd.f32 0.0, %v1147
      %v1149 = vpop.f32.mrf.mxu0
      %v1150 = vadd.f32 0.0, %v1149
      %1151 = vmatmul.bf16.gmra.mxu0 %v700
      %v1152 = vpop.f32.mrf.mxu0
      %v1153 = vadd.f32 0.0, %v1152
      %v1154 = vpop.f32.mrf.mxu0
      %v1155 = vadd.f32 0.0, %v1154
      %1156 = vmatmul.bf16.gmra.mxu0 %v702
      %v1157 = vpop.f32.mrf.mxu0
      %v1158 = vadd.f32 0.0, %v1157
      %v1159 = vpop.f32.mrf.mxu0
      %v1160 = vadd.f32 0.0, %v1159
      %1161 = vmatmul.bf16.gmra.mxu0 %v704
      %v1162 = vpop.f32.mrf.mxu0
      %v1163 = vadd.f32 0.0, %v1162
      %v1164 = vpop.f32.mrf.mxu0
      %v1165 = vadd.f32 0.0, %v1164
      %1166 = vmatmul.bf16.gmra.mxu0 %v706
      %v1167 = vpop.f32.mrf.mxu0
      %v1168 = vadd.f32 0.0, %v1167
      %v1169 = vpop.f32.mrf.mxu0
      %v1170 = vadd.f32 0.0, %v1169
      %1171 = vmatmul.bf16.gmra.mxu0 %v708
      %v1172 = vpop.f32.mrf.mxu0
      %v1173 = vadd.f32 0.0, %v1172
      %v1174 = vpop.f32.mrf.mxu0
      %v1175 = vadd.f32 0.0, %v1174
      %1176 = vmatmul.bf16.gmra.mxu0 %v710
      %v1177 = vpop.f32.mrf.mxu0
      %v1178 = vadd.f32 0.0, %v1177
      %v1179 = vpop.f32.mrf.mxu0
      %v1180 = vadd.f32 0.0, %v1179
      %1181 = vmatmul.bf16.gmra.mxu0 %v712
      %v1182 = vpop.f32.mrf.mxu0
      %v1183 = vadd.f32 0.0, %v1182
      %v1184 = vpop.f32.mrf.mxu0
      %v1185 = vadd.f32 0.0, %v1184
      %1186 = vmatmul.bf16.gmra.mxu0 %v714
      %v1187 = vpop.f32.mrf.mxu0
      %v1188 = vadd.f32 0.0, %v1187
      %v1189 = vpop.f32.mrf.mxu0
      %v1190 = vadd.f32 0.0, %v1189
      %1191 = vmatmul.bf16.gmra.mxu0 %v716
      %v1192 = vpop.f32.mrf.mxu0
      %v1193 = vadd.f32 0.0, %v1192
      %v1194 = vpop.f32.mrf.mxu0
      %v1195 = vadd.f32 0.0, %v1194
      %1196 = vmatmul.bf16.gmra.mxu0 %v718
      %v1197 = vpop.f32.mrf.mxu0
      %v1198 = vadd.f32 0.0, %v1197
      %v1199 = vpop.f32.mrf.mxu0
      %v1200 = vadd.f32 0.0, %v1199
      %1201 = vmatmul.bf16.gmra.mxu0 %v720
      %v1202 = vpop.f32.mrf.mxu0
      %v1203 = vadd.f32 0.0, %v1202
      %v1204 = vpop.f32.mrf.mxu0
      %v1205 = vadd.f32 0.0, %v1204
      %1206 = vmatmul.bf16.gmra.mxu0 %v722
      %v1207 = vpop.f32.mrf.mxu0
      %v1208 = vadd.f32 0.0, %v1207
      %v1209 = vpop.f32.mrf.mxu0
      %v1210 = vadd.f32 0.0, %v1209
      %1211 = vmatmul.bf16.gmra.mxu0 %v724
      %v1212 = vpop.f32.mrf.mxu0
      %v1213 = vadd.f32 0.0, %v1212
      %v1214 = vpop.f32.mrf.mxu0
      %v1215 = vadd.f32 0.0, %v1214
      %1216 = vmatmul.bf16.gmra.mxu0 %v726
      %v1217 = vpop.f32.mrf.mxu0
      %v1218 = vadd.f32 0.0, %v1217
      %v1219 = vpop.f32.mrf.mxu0
      %v1220 = vadd.f32 0.0, %v1219
      %1221 = vmatmul.bf16.gmra.mxu0 %v728
      %v1222 = vpop.f32.mrf.mxu0
      %v1223 = vadd.f32 0.0, %v1222
      %v1224 = vpop.f32.mrf.mxu0
      %v1225 = vadd.f32 0.0, %v1224
      %1226 = vmatmul.bf16.gmra.mxu0 %v730
      %v1227 = vpop.f32.mrf.mxu0
      %v1228 = vadd.f32 0.0, %v1227
      %v1229 = vpop.f32.mrf.mxu0
      %v1230 = vadd.f32 0.0, %v1229
      %1231 = vmatmul.bf16.gmra.mxu0 %v732
      %v1232 = vpop.f32.mrf.mxu0
      %v1233 = vadd.f32 0.0, %v1232
      %v1234 = vpop.f32.mrf.mxu0
      %v1235 = vadd.f32 0.0, %v1234
      %1236 = vmatmul.bf16.gmra.mxu0 %v734
      %v1237 = vpop.f32.mrf.mxu0
      %v1238 = vadd.f32 0.0, %v1237
      %v1239 = vpop.f32.mrf.mxu0
      %v1240 = vadd.f32 0.0, %v1239
      %1241 = vmatmul.bf16.gmra.mxu0 %v736
      %v1242 = vpop.f32.mrf.mxu0
      %v1243 = vadd.f32 0.0, %v1242
      %v1244 = vpop.f32.mrf.mxu0
      %v1245 = vadd.f32 0.0, %v1244
      %1246 = vmatmul.bf16.gmra.mxu0 %v738
      %v1247 = vpop.f32.mrf.mxu0
      %v1248 = vadd.f32 0.0, %v1247
      %v1249 = vpop.f32.mrf.mxu0
      %v1250 = vadd.f32 0.0, %v1249
      %1251 = vmatmul.bf16.gmra.mxu0 %v740
      %v1252 = vpop.f32.mrf.mxu0
      %v1253 = vadd.f32 0.0, %v1252
      %v1254 = vpop.f32.mrf.mxu0
      %v1255 = vadd.f32 0.0, %v1254
      %1256 = vmatmul.bf16.gmra.mxu0 %v742
      %v1257 = vpop.f32.mrf.mxu0
      %v1258 = vadd.f32 0.0, %v1257
      %v1259 = vpop.f32.mrf.mxu0
      %v1260 = vadd.f32 0.0, %v1259
      %1261 = vmatmul.bf16.gmra.mxu0 %v744
      %v1262 = vpop.f32.mrf.mxu0
      %v1263 = vadd.f32 0.0, %v1262
      %v1264 = vpop.f32.mrf.mxu0
      %v1265 = vadd.f32 0.0, %v1264
      %1266 = vmatmul.bf16.gmra.mxu0 %v746
      %v1267 = vpop.f32.mrf.mxu0
      %v1268 = vadd.f32 0.0, %v1267
      %v1269 = vpop.f32.mrf.mxu0
      %v1270 = vadd.f32 0.0, %v1269
      %1271 = vmatmul.bf16.gmra.mxu0 %v748
      %v1272 = vpop.f32.mrf.mxu0
      %v1273 = vadd.f32 0.0, %v1272
      %v1274 = vpop.f32.mrf.mxu0
      %v1275 = vadd.f32 0.0, %v1274
      %1276 = vmatmul.bf16.gmra.mxu0 %v750
      %v1277 = vpop.f32.mrf.mxu0
      %v1278 = vadd.f32 0.0, %v1277
      %v1279 = vpop.f32.mrf.mxu0
      %v1280 = vadd.f32 0.0, %v1279
      %1281 = vmatmul.bf16.gmra.mxu0 %v752
      %v1282 = vpop.f32.mrf.mxu0
      %v1283 = vadd.f32 0.0, %v1282
      %v1284 = vpop.f32.mrf.mxu0
      %v1285 = vadd.f32 0.0, %v1284
      %1286 = vmatmul.bf16.gmra.mxu0 %v754
      %v1287 = vpop.f32.mrf.mxu0
      %v1288 = vadd.f32 0.0, %v1287
      %v1289 = vpop.f32.mrf.mxu0
      %v1290 = vadd.f32 0.0, %v1289
      %1291 = vmatmul.bf16.gmra.mxu0 %v756
      %v1292 = vpop.f32.mrf.mxu0
      %v1293 = vadd.f32 0.0, %v1292
      %v1294 = vpop.f32.mrf.mxu0
      %v1295 = vadd.f32 0.0, %v1294
      %1296 = vmatmul.bf16.gmra.mxu0 %v758
      %v1297 = vpop.f32.mrf.mxu0
      %v1298 = vadd.f32 0.0, %v1297
      %v1299 = vpop.f32.mrf.mxu0
      %v1300 = vadd.f32 0.0, %v1299
      %1301 = vmatmul.bf16.gmra.mxu0 %v760
      %v1302 = vpop.f32.mrf.mxu0
      %v1303 = vadd.f32 0.0, %v1302
      %v1304 = vpop.f32.mrf.mxu0
      %v1305 = vadd.f32 0.0, %v1304
      %1306 = vmatmul.bf16.gmra.mxu0 %v762
      %v1307 = vpop.f32.mrf.mxu0
      %v1308 = vadd.f32 0.0, %v1307
      %v1309 = vpop.f32.mrf.mxu0
      %v1310 = vadd.f32 0.0, %v1309
      %1311 = vmatmul.bf16.gmra.mxu0 %v764
      %v1312 = vpop.f32.mrf.mxu0
      %v1313 = vadd.f32 0.0, %v1312
      %v1314 = vpop.f32.mrf.mxu0
      %v1315 = vadd.f32 0.0, %v1314
      %1316 = vmatmul.bf16.gmra.mxu0 %v766
      %v1317 = vpop.f32.mrf.mxu0
      %v1318 = vadd.f32 0.0, %v1317
      %v1319 = vpop.f32.mrf.mxu0
      %v1320 = vadd.f32 0.0, %v1319
      %1321 = vmatmul.bf16.gmra.mxu0 %v768
      %v1322 = vpop.f32.mrf.mxu0
      %v1323 = vadd.f32 0.0, %v1322
      %v1324 = vpop.f32.mrf.mxu0
      %v1325 = vadd.f32 0.0, %v1324
      %1326 = vmatmul.bf16.gmra.mxu0 %v770
      %v1327 = vpop.f32.mrf.mxu0
      %v1328 = vadd.f32 0.0, %v1327
      %v1329 = vpop.f32.mrf.mxu0
      %v1330 = vadd.f32 0.0, %v1329
      %1331 = vmatmul.bf16.gmra.mxu0 %v772
      %v1332 = vpop.f32.mrf.mxu0
      %v1333 = vadd.f32 0.0, %v1332
      %v1334 = vpop.f32.mrf.mxu0
      %v1335 = vadd.f32 0.0, %v1334
      %1336 = vmatmul.bf16.gmra.mxu0 %v774
      %v1337 = vpop.f32.mrf.mxu0
      %v1338 = vadd.f32 0.0, %v1337
      %v1339 = vpop.f32.mrf.mxu0
      %v1340 = vadd.f32 0.0, %v1339
      %1341 = vmatmul.bf16.gmra.mxu0 %v776
      %v1342 = vpop.f32.mrf.mxu0
      %v1343 = vadd.f32 0.0, %v1342
      %v1344 = vpop.f32.mrf.mxu0
      %v1345 = vadd.f32 0.0, %v1344
      %1346 = vmatmul.bf16.gmra.mxu0 %v778
      %v1347 = vpop.f32.mrf.mxu0
      %v1348 = vadd.f32 0.0, %v1347
      %v1349 = vpop.f32.mrf.mxu0
      %v1350 = vadd.f32 0.0, %v1349
      %1351 = vmatmul.bf16.gmra.mxu0 %v780
      %v1352 = vpop.f32.mrf.mxu0
      %v1353 = vadd.f32 0.0, %v1352
      %v1354 = vpop.f32.mrf.mxu0
      %v1355 = vadd.f32 0.0, %v1354
      %1356 = vmatmul.bf16.gmra.mxu0 %v782
      %v1357 = vpop.f32.mrf.mxu0
      %v1358 = vadd.f32 0.0, %v1357
      %v1359 = vpop.f32.mrf.mxu0
      %v1360 = vadd.f32 0.0, %v1359
      %1361 = vdwg.mxu0
      %1362 = vmatpush.bf16.msra.mxu0 0
      %1363 = vmatpush.bf16.msra.mxu0 0
      %1364 = vmatpush.bf16.msra.mxu0 0
      %1365 = vmatpush.bf16.msra.mxu0 0
      %1366 = vmatpush.bf16.msra.mxu0 0
      %1367 = vmatpush.bf16.msra.mxu0 0
      %1368 = vmatpush.bf16.msra.mxu0 %v1071
      %1369 = vmatpush.bf16.msra.mxu0 %v886
      %1370 = vmatmul.bf16.gmra.mxu0 %v899
      %v1371 = vpop.f32.mrf.mxu0
      %v1372 = vadd.f32 %v1083, %v1371
      %v1373 = vpop.f32.mrf.mxu0
      %v1374 = vadd.f32 %v1085, %v1373
      %1375 = vmatmul.bf16.gmra.mxu0 %v902
      %v1376 = vpop.f32.mrf.mxu0
      %v1377 = vadd.f32 %v1088, %v1376
      %v1378 = vpop.f32.mrf.mxu0
      %v1379 = vadd.f32 %v1090, %v1378
      %1380 = vmatmul.bf16.gmra.mxu0 %v905
      %v1381 = vpop.f32.mrf.mxu0
      %v1382 = vadd.f32 %v1093, %v1381
      %v1383 = vpop.f32.mrf.mxu0
      %v1384 = vadd.f32 %v1095, %v1383
      %1385 = vmatmul.bf16.gmra.mxu0 %v908
      %v1386 = vpop.f32.mrf.mxu0
      %v1387 = vadd.f32 %v1098, %v1386
      %v1388 = vpop.f32.mrf.mxu0
      %v1389 = vadd.f32 %v1100, %v1388
      %1390 = vmatmul.bf16.gmra.mxu0 %v911
      %v1391 = vpop.f32.mrf.mxu0
      %v1392 = vadd.f32 %v1103, %v1391
      %v1393 = vpop.f32.mrf.mxu0
      %v1394 = vadd.f32 %v1105, %v1393
      %1395 = vmatmul.bf16.gmra.mxu0 %v914
      %v1396 = vpop.f32.mrf.mxu0
      %v1397 = vadd.f32 %v1108, %v1396
      %v1398 = vpop.f32.mrf.mxu0
      %v1399 = vadd.f32 %v1110, %v1398
      %1400 = vmatmul.bf16.gmra.mxu0 %v917
      %v1401 = vpop.f32.mrf.mxu0
      %v1402 = vadd.f32 %v1113, %v1401
      %v1403 = vpop.f32.mrf.mxu0
      %v1404 = vadd.f32 %v1115, %v1403
      %1405 = vmatmul.bf16.gmra.mxu0 %v920
      %v1406 = vpop.f32.mrf.mxu0
      %v1407 = vadd.f32 %v1118, %v1406
      %v1408 = vpop.f32.mrf.mxu0
      %v1409 = vadd.f32 %v1120, %v1408
      %1410 = vmatmul.bf16.gmra.mxu0 %v923
      %v1411 = vpop.f32.mrf.mxu0
      %v1412 = vadd.f32 %v1123, %v1411
      %v1413 = vpop.f32.mrf.mxu0
      %v1414 = vadd.f32 %v1125, %v1413
      %1415 = vmatmul.bf16.gmra.mxu0 %v926
      %v1416 = vpop.f32.mrf.mxu0
      %v1417 = vadd.f32 %v1128, %v1416
      %v1418 = vpop.f32.mrf.mxu0
      %v1419 = vadd.f32 %v1130, %v1418
      %1420 = vmatmul.bf16.gmra.mxu0 %v929
      %v1421 = vpop.f32.mrf.mxu0
      %v1422 = vadd.f32 %v1133, %v1421
      %v1423 = vpop.f32.mrf.mxu0
      %v1424 = vadd.f32 %v1135, %v1423
      %1425 = vmatmul.bf16.gmra.mxu0 %v932
      %v1426 = vpop.f32.mrf.mxu0
      %v1427 = vadd.f32 %v1138, %v1426
      %v1428 = vpop.f32.mrf.mxu0
      %v1429 = vadd.f32 %v1140, %v1428
      %1430 = vmatmul.bf16.gmra.mxu0 %v935
      %v1431 = vpop.f32.mrf.mxu0
      %v1432 = vadd.f32 %v1143, %v1431
      %v1433 = vpop.f32.mrf.mxu0
      %v1434 = vadd.f32 %v1145, %v1433
      %1435 = vmatmul.bf16.gmra.mxu0 %v938
      %v1436 = vpop.f32.mrf.mxu0
      %v1437 = vadd.f32 %v1148, %v1436
      %v1438 = vpop.f32.mrf.mxu0
      %v1439 = vadd.f32 %v1150, %v1438
      %1440 = vmatmul.bf16.gmra.mxu0 %v941
      %v1441 = vpop.f32.mrf.mxu0
      %v1442 = vadd.f32 %v1153, %v1441
      %v1443 = vpop.f32.mrf.mxu0
      %v1444 = vadd.f32 %v1155, %v1443
      %1445 = vmatmul.bf16.gmra.mxu0 %v944
      %v1446 = vpop.f32.mrf.mxu0
      %v1447 = vadd.f32 %v1158, %v1446
      %v1448 = vpop.f32.mrf.mxu0
      %v1449 = vadd.f32 %v1160, %v1448
      %1450 = vmatmul.bf16.gmra.mxu0 %v947
      %v1451 = vpop.f32.mrf.mxu0
      %v1452 = vadd.f32 %v1163, %v1451
      %v1453 = vpop.f32.mrf.mxu0
      %v1454 = vadd.f32 %v1165, %v1453
      %1455 = vmatmul.bf16.gmra.mxu0 %v950
      %v1456 = vpop.f32.mrf.mxu0
      %v1457 = vadd.f32 %v1168, %v1456
      %v1458 = vpop.f32.mrf.mxu0
      %v1459 = vadd.f32 %v1170, %v1458
      %1460 = vmatmul.bf16.gmra.mxu0 %v953
      %v1461 = vpop.f32.mrf.mxu0
      %v1462 = vadd.f32 %v1173, %v1461
      %v1463 = vpop.f32.mrf.mxu0
      %v1464 = vadd.f32 %v1175, %v1463
      %1465 = vmatmul.bf16.gmra.mxu0 %v956
      %v1466 = vpop.f32.mrf.mxu0
      %v1467 = vadd.f32 %v1178, %v1466
      %v1468 = vpop.f32.mrf.mxu0
      %v1469 = vadd.f32 %v1180, %v1468
      %1470 = vmatmul.bf16.gmra.mxu0 %v959
      %v1471 = vpop.f32.mrf.mxu0
      %v1472 = vadd.f32 %v1183, %v1471
      %v1473 = vpop.f32.mrf.mxu0
      %v1474 = vadd.f32 %v1185, %v1473
      %1475 = vmatmul.bf16.gmra.mxu0 %v962
      %v1476 = vpop.f32.mrf.mxu0
      %v1477 = vadd.f32 %v1188, %v1476
      %v1478 = vpop.f32.mrf.mxu0
      %v1479 = vadd.f32 %v1190, %v1478
      %1480 = vmatmul.bf16.gmra.mxu0 %v965
      %v1481 = vpop.f32.mrf.mxu0
      %v1482 = vadd.f32 %v1193, %v1481
      %v1483 = vpop.f32.mrf.mxu0
      %v1484 = vadd.f32 %v1195, %v1483
      %1485 = vmatmul.bf16.gmra.mxu0 %v968
      %v1486 = vpop.f32.mrf.mxu0
      %v1487 = vadd.f32 %v1198, %v1486
      %v1488 = vpop.f32.mrf.mxu0
      %v1489 = vadd.f32 %v1200, %v1488
      %1490 = vmatmul.bf16.gmra.mxu0 %v971
      %v1491 = vpop.f32.mrf.mxu0
      %v1492 = vadd.f32 %v1203, %v1491
      %v1493 = vpop.f32.mrf.mxu0
      %v1494 = vadd.f32 %v1205, %v1493
      %1495 = vmatmul.bf16.gmra.mxu0 %v974
      %v1496 = vpop.f32.mrf.mxu0
      %v1497 = vadd.f32 %v1208, %v1496
      %v1498 = vpop.f32.mrf.mxu0
      %v1499 = vadd.f32 %v1210, %v1498
      %1500 = vmatmul.bf16.gmra.mxu0 %v977
      %v1501 = vpop.f32.mrf.mxu0
      %v1502 = vadd.f32 %v1213, %v1501
      %v1503 = vpop.f32.mrf.mxu0
      %v1504 = vadd.f32 %v1215, %v1503
      %1505 = vmatmul.bf16.gmra.mxu0 %v980
      %v1506 = vpop.f32.mrf.mxu0
      %v1507 = vadd.f32 %v1218, %v1506
      %v1508 = vpop.f32.mrf.mxu0
      %v1509 = vadd.f32 %v1220, %v1508
      %1510 = vmatmul.bf16.gmra.mxu0 %v983
      %v1511 = vpop.f32.mrf.mxu0
      %v1512 = vadd.f32 %v1223, %v1511
      %v1513 = vpop.f32.mrf.mxu0
      %v1514 = vadd.f32 %v1225, %v1513
      %1515 = vmatmul.bf16.gmra.mxu0 %v986
      %v1516 = vpop.f32.mrf.mxu0
      %v1517 = vadd.f32 %v1228, %v1516
      %v1518 = vpop.f32.mrf.mxu0
      %v1519 = vadd.f32 %v1230, %v1518
      %1520 = vmatmul.bf16.gmra.mxu0 %v989
      %v1521 = vpop.f32.mrf.mxu0
      %v1522 = vadd.f32 %v1233, %v1521
      %v1523 = vpop.f32.mrf.mxu0
      %v1524 = vadd.f32 %v1235, %v1523
      %1525 = vmatmul.bf16.gmra.mxu0 %v992
      %v1526 = vpop.f32.mrf.mxu0
      %v1527 = vadd.f32 %v1238, %v1526
      %v1528 = vpop.f32.mrf.mxu0
      %v1529 = vadd.f32 %v1240, %v1528
      %1530 = vmatmul.bf16.gmra.mxu0 %v995
      %v1531 = vpop.f32.mrf.mxu0
      %v1532 = vadd.f32 %v1243, %v1531
      %v1533 = vpop.f32.mrf.mxu0
      %v1534 = vadd.f32 %v1245, %v1533
      %1535 = vmatmul.bf16.gmra.mxu0 %v998
      %v1536 = vpop.f32.mrf.mxu0
      %v1537 = vadd.f32 %v1248, %v1536
      %v1538 = vpop.f32.mrf.mxu0
      %v1539 = vadd.f32 %v1250, %v1538
      %1540 = vmatmul.bf16.gmra.mxu0 %v1001
      %v1541 = vpop.f32.mrf.mxu0
      %v1542 = vadd.f32 %v1253, %v1541
      %v1543 = vpop.f32.mrf.mxu0
      %v1544 = vadd.f32 %v1255, %v1543
      %1545 = vmatmul.bf16.gmra.mxu0 %v1004
      %v1546 = vpop.f32.mrf.mxu0
      %v1547 = vadd.f32 %v1258, %v1546
      %v1548 = vpop.f32.mrf.mxu0
      %v1549 = vadd.f32 %v1260, %v1548
      %1550 = vmatmul.bf16.gmra.mxu0 %v1007
      %v1551 = vpop.f32.mrf.mxu0
      %v1552 = vadd.f32 %v1263, %v1551
      %v1553 = vpop.f32.mrf.mxu0
      %v1554 = vadd.f32 %v1265, %v1553
      %1555 = vmatmul.bf16.gmra.mxu0 %v1010
      %v1556 = vpop.f32.mrf.mxu0
      %v1557 = vadd.f32 %v1268, %v1556
      %v1558 = vpop.f32.mrf.mxu0
      %v1559 = vadd.f32 %v1270, %v1558
      %1560 = vmatmul.bf16.gmra.mxu0 %v1013
      %v1561 = vpop.f32.mrf.mxu0
      %v1562 = vadd.f32 %v1273, %v1561
      %v1563 = vpop.f32.mrf.mxu0
      %v1564 = vadd.f32 %v1275, %v1563
      %1565 = vmatmul.bf16.gmra.mxu0 %v1016
      %v1566 = vpop.f32.mrf.mxu0
      %v1567 = vadd.f32 %v1278, %v1566
      %v1568 = vpop.f32.mrf.mxu0
      %v1569 = vadd.f32 %v1280, %v1568
      %1570 = vmatmul.bf16.gmra.mxu0 %v1019
      %v1571 = vpop.f32.mrf.mxu0
      %v1572 = vadd.f32 %v1283, %v1571
      %v1573 = vpop.f32.mrf.mxu0
      %v1574 = vadd.f32 %v1285, %v1573
      %1575 = vmatmul.bf16.gmra.mxu0 %v1022
      %v1576 = vpop.f32.mrf.mxu0
      %v1577 = vadd.f32 %v1288, %v1576
      %v1578 = vpop.f32.mrf.mxu0
      %v1579 = vadd.f32 %v1290, %v1578
      %1580 = vmatmul.bf16.gmra.mxu0 %v1025
      %v1581 = vpop.f32.mrf.mxu0
      %v1582 = vadd.f32 %v1293, %v1581
      %v1583 = vpop.f32.mrf.mxu0
      %v1584 = vadd.f32 %v1295, %v1583
      %1585 = vmatmul.bf16.gmra.mxu0 %v1028
      %v1586 = vpop.f32.mrf.mxu0
      %v1587 = vadd.f32 %v1298, %v1586
      %v1588 = vpop.f32.mrf.mxu0
      %v1589 = vadd.f32 %v1300, %v1588
      %1590 = vmatmul.bf16.gmra.mxu0 %v1031
      %v1591 = vpop.f32.mrf.mxu0
      %v1592 = vadd.f32 %v1303, %v1591
      %v1593 = vpop.f32.mrf.mxu0
      %v1594 = vadd.f32 %v1305, %v1593
      %1595 = vmatmul.bf16.gmra.mxu0 %v1034
      %v1596 = vpop.f32.mrf.mxu0
      %v1597 = vadd.f32 %v1308, %v1596
      %v1598 = vpop.f32.mrf.mxu0
      %v1599 = vadd.f32 %v1310, %v1598
      %1600 = vmatmul.bf16.gmra.mxu0 %v1037
      %v1601 = vpop.f32.mrf.mxu0
      %v1602 = vadd.f32 %v1313, %v1601
      %v1603 = vpop.f32.mrf.mxu0
      %v1604 = vadd.f32 %v1315, %v1603
      %1605 = vmatmul.bf16.gmra.mxu0 %v1040
      %v1606 = vpop.f32.mrf.mxu0
      %v1607 = vadd.f32 %v1318, %v1606
      %v1608 = vpop.f32.mrf.mxu0
      %v1609 = vadd.f32 %v1320, %v1608
      %1610 = vmatmul.bf16.gmra.mxu0 %v1043
      %v1611 = vpop.f32.mrf.mxu0
      %v1612 = vadd.f32 %v1323, %v1611
      %v1613 = vpop.f32.mrf.mxu0
      %v1614 = vadd.f32 %v1325, %v1613
      %1615 = vmatmul.bf16.gmra.mxu0 %v1046
      %v1616 = vpop.f32.mrf.mxu0
      %v1617 = vadd.f32 %v1328, %v1616
      %v1618 = vpop.f32.mrf.mxu0
      %v1619 = vadd.f32 %v1330, %v1618
      %1620 = vmatmul.bf16.gmra.mxu0 %v1049
      %v1621 = vpop.f32.mrf.mxu0
      %v1622 = vadd.f32 %v1333, %v1621
      %v1623 = vpop.f32.mrf.mxu0
      %v1624 = vadd.f32 %v1335, %v1623
      %1625 = vmatmul.bf16.gmra.mxu0 %v1052
      %v1626 = vpop.f32.mrf.mxu0
      %v1627 = vadd.f32 %v1338, %v1626
      %v1628 = vpop.f32.mrf.mxu0
      %v1629 = vadd.f32 %v1340, %v1628
      %1630 = vmatmul.bf16.gmra.mxu0 %v1055
      %v1631 = vpop.f32.mrf.mxu0
      %v1632 = vadd.f32 %v1343, %v1631
      %v1633 = vpop.f32.mrf.mxu0
      %v1634 = vadd.f32 %v1345, %v1633
      %1635 = vmatmul.bf16.gmra.mxu0 %v1058
      %v1636 = vpop.f32.mrf.mxu0
      %v1637 = vadd.f32 %v1348, %v1636
      %v1638 = vpop.f32.mrf.mxu0
      %v1639 = vadd.f32 %v1350, %v1638
      %1640 = vmatmul.bf16.gmra.mxu0 %v1061
      %v1641 = vpop.f32.mrf.mxu0
      %v1642 = vadd.f32 %v1353, %v1641
      %v1643 = vpop.f32.mrf.mxu0
      %v1644 = vadd.f32 %v1355, %v1643
      %1645 = vmatmul.bf16.gmra.mxu0 %v1064
      %v1646 = vpop.f32.mrf.mxu0
      %v1647 = vadd.f32 %v1358, %v1646
      %v1648 = vpop.f32.mrf.mxu0
      %v1649 = vadd.f32 %v1360, %v1648
      %1650 = vdwg.mxu0
      %v1651 = vld [vmem:[%s2] sm:$0x1]
      %v1653 = vperm.slane %v1651, 0
      %v1655 = vmul.f32 %v1372, %v1653
      %v1656 = vmul.f32 %v1374, %v1653
      %v1657 = vmul.f32 %v1377, %v1653
      %v1658 = vmul.f32 %v1379, %v1653
      %v1659 = vmul.f32 %v1382, %v1653
      %v1660 = vmul.f32 %v1384, %v1653
      %v1661 = vmul.f32 %v1387, %v1653
      %v1662 = vmul.f32 %v1389, %v1653
      %v1663 = vmul.f32 %v1392, %v1653
      %v1664 = vmul.f32 %v1394, %v1653
      %v1665 = vmul.f32 %v1397, %v1653
      %v1666 = vmul.f32 %v1399, %v1653
      %v1667 = vmul.f32 %v1402, %v1653
      %v1668 = vmul.f32 %v1404, %v1653
      %v1669 = vmul.f32 %v1407, %v1653
      %v1670 = vmul.f32 %v1409, %v1653
      %v1671 = vmul.f32 %v1412, %v1653
      %v1672 = vmul.f32 %v1414, %v1653
      %v1673 = vmul.f32 %v1417, %v1653
      %v1674 = vmul.f32 %v1419, %v1653
      %v1675 = vmul.f32 %v1422, %v1653
      %v1676 = vmul.f32 %v1424, %v1653
      %v1677 = vmul.f32 %v1427, %v1653
      %v1678 = vmul.f32 %v1429, %v1653
      %v1679 = vmul.f32 %v1432, %v1653
      %v1680 = vmul.f32 %v1434, %v1653
      %v1681 = vmul.f32 %v1437, %v1653
      %v1682 = vmul.f32 %v1439, %v1653
      %v1683 = vmul.f32 %v1442, %v1653
      %v1684 = vmul.f32 %v1444, %v1653
      %v1685 = vmul.f32 %v1447, %v1653
      %v1686 = vmul.f32 %v1449, %v1653
      %v1687 = vmul.f32 %v1452, %v1653
      %v1688 = vmul.f32 %v1454, %v1653
      %v1689 = vmul.f32 %v1457, %v1653
      %v1690 = vmul.f32 %v1459, %v1653
      %v1691 = vmul.f32 %v1462, %v1653
      %v1692 = vmul.f32 %v1464, %v1653
      %v1693 = vmul.f32 %v1467, %v1653
      %v1694 = vmul.f32 %v1469, %v1653
      %v1695 = vmul.f32 %v1472, %v1653
      %v1696 = vmul.f32 %v1474, %v1653
      %v1697 = vmul.f32 %v1477, %v1653
      %v1698 = vmul.f32 %v1479, %v1653
      %v1699 = vmul.f32 %v1482, %v1653
      %v1700 = vmul.f32 %v1484, %v1653
      %v1701 = vmul.f32 %v1487, %v1653
      %v1702 = vmul.f32 %v1489, %v1653
      %v1703 = vmul.f32 %v1492, %v1653
      %v1704 = vmul.f32 %v1494, %v1653
      %v1705 = vmul.f32 %v1497, %v1653
      %v1706 = vmul.f32 %v1499, %v1653
      %v1707 = vmul.f32 %v1502, %v1653
      %v1708 = vmul.f32 %v1504, %v1653
      %v1709 = vmul.f32 %v1507, %v1653
      %v1710 = vmul.f32 %v1509, %v1653
      %v1711 = vmul.f32 %v1512, %v1653
      %v1712 = vmul.f32 %v1514, %v1653
      %v1713 = vmul.f32 %v1517, %v1653
      %v1714 = vmul.f32 %v1519, %v1653
      %v1715 = vmul.f32 %v1522, %v1653
      %v1716 = vmul.f32 %v1524, %v1653
      %v1717 = vmul.f32 %v1527, %v1653
      %v1718 = vmul.f32 %v1529, %v1653
      %v1719 = vmul.f32 %v1532, %v1653
      %v1720 = vmul.f32 %v1534, %v1653
      %v1721 = vmul.f32 %v1537, %v1653
      %v1722 = vmul.f32 %v1539, %v1653
      %v1723 = vmul.f32 %v1542, %v1653
      %v1724 = vmul.f32 %v1544, %v1653
      %v1725 = vmul.f32 %v1547, %v1653
      %v1726 = vmul.f32 %v1549, %v1653
      %v1727 = vmul.f32 %v1552, %v1653
      %v1728 = vmul.f32 %v1554, %v1653
      %v1729 = vmul.f32 %v1557, %v1653
      %v1730 = vmul.f32 %v1559, %v1653
      %v1731 = vmul.f32 %v1562, %v1653
      %v1732 = vmul.f32 %v1564, %v1653
      %v1733 = vmul.f32 %v1567, %v1653
      %v1734 = vmul.f32 %v1569, %v1653
      %v1735 = vmul.f32 %v1572, %v1653
      %v1736 = vmul.f32 %v1574, %v1653
      %v1737 = vmul.f32 %v1577, %v1653
      %v1738 = vmul.f32 %v1579, %v1653
      %v1739 = vmul.f32 %v1582, %v1653
      %v1740 = vmul.f32 %v1584, %v1653
      %v1741 = vmul.f32 %v1587, %v1653
      %v1742 = vmul.f32 %v1589, %v1653
      %v1743 = vmul.f32 %v1592, %v1653
      %v1744 = vmul.f32 %v1594, %v1653
      %v1745 = vmul.f32 %v1597, %v1653
      %v1746 = vmul.f32 %v1599, %v1653
      %v1747 = vmul.f32 %v1602, %v1653
      %v1748 = vmul.f32 %v1604, %v1653
      %v1749 = vmul.f32 %v1607, %v1653
      %v1750 = vmul.f32 %v1609, %v1653
      %v1751 = vmul.f32 %v1612, %v1653
      %v1752 = vmul.f32 %v1614, %v1653
      %v1753 = vmul.f32 %v1617, %v1653
      %v1754 = vmul.f32 %v1619, %v1653
      %v1755 = vmul.f32 %v1622, %v1653
      %v1756 = vmul.f32 %v1624, %v1653
      %v1757 = vmul.f32 %v1627, %v1653
      %v1758 = vmul.f32 %v1629, %v1653
      %v1759 = vmul.f32 %v1632, %v1653
      %v1760 = vmul.f32 %v1634, %v1653
      %v1761 = vmul.f32 %v1637, %v1653
      %v1762 = vmul.f32 %v1639, %v1653
      %v1763 = vmul.f32 %v1642, %v1653
      %v1764 = vmul.f32 %v1644, %v1653
      %v1765 = vmul.f32 %v1647, %v1653
      %v1766 = vmul.f32 %v1649, %v1653
      %v1767 = vld [vmem:[%s3] sm:$0x1]
      %v1769 = vperm.slane %v1767, 0
      %v1771 = vadd.f32 %v1655, %v1769
      %v1772 = vadd.f32 %v1656, %v1769
      %v1773 = vadd.f32 %v1657, %v1769
      %v1774 = vadd.f32 %v1658, %v1769
      %v1775 = vadd.f32 %v1659, %v1769
      %v1776 = vadd.f32 %v1660, %v1769
      %v1777 = vadd.f32 %v1661, %v1769
      %v1778 = vadd.f32 %v1662, %v1769
      %v1779 = vadd.f32 %v1663, %v1769
      %v1780 = vadd.f32 %v1664, %v1769
      %v1781 = vadd.f32 %v1665, %v1769
      %v1782 = vadd.f32 %v1666, %v1769
      %v1783 = vadd.f32 %v1667, %v1769
      %v1784 = vadd.f32 %v1668, %v1769
      %v1785 = vadd.f32 %v1669, %v1769
      %v1786 = vadd.f32 %v1670, %v1769
      %v1787 = vadd.f32 %v1671, %v1769
      %v1788 = vadd.f32 %v1672, %v1769
      %v1789 = vadd.f32 %v1673, %v1769
      %v1790 = vadd.f32 %v1674, %v1769
      %v1791 = vadd.f32 %v1675, %v1769
      %v1792 = vadd.f32 %v1676, %v1769
      %v1793 = vadd.f32 %v1677, %v1769
      %v1794 = vadd.f32 %v1678, %v1769
      %v1795 = vadd.f32 %v1679, %v1769
      %v1796 = vadd.f32 %v1680, %v1769
      %v1797 = vadd.f32 %v1681, %v1769
      %v1798 = vadd.f32 %v1682, %v1769
      %v1799 = vadd.f32 %v1683, %v1769
      %v1800 = vadd.f32 %v1684, %v1769
      %v1801 = vadd.f32 %v1685, %v1769
      %v1802 = vadd.f32 %v1686, %v1769
      %v1803 = vadd.f32 %v1687, %v1769
      %v1804 = vadd.f32 %v1688, %v1769
      %v1805 = vadd.f32 %v1689, %v1769
      %v1806 = vadd.f32 %v1690, %v1769
      %v1807 = vadd.f32 %v1691, %v1769
      %v1808 = vadd.f32 %v1692, %v1769
      %v1809 = vadd.f32 %v1693, %v1769
      %v1810 = vadd.f32 %v1694, %v1769
      %v1811 = vadd.f32 %v1695, %v1769
      %v1812 = vadd.f32 %v1696, %v1769
      %v1813 = vadd.f32 %v1697, %v1769
      %v1814 = vadd.f32 %v1698, %v1769
      %v1815 = vadd.f32 %v1699, %v1769
      %v1816 = vadd.f32 %v1700, %v1769
      %v1817 = vadd.f32 %v1701, %v1769
      %v1818 = vadd.f32 %v1702, %v1769
      %v1819 = vadd.f32 %v1703, %v1769
      %v1820 = vadd.f32 %v1704, %v1769
      %v1821 = vadd.f32 %v1705, %v1769
      %v1822 = vadd.f32 %v1706, %v1769
      %v1823 = vadd.f32 %v1707, %v1769
      %v1824 = vadd.f32 %v1708, %v1769
      %v1825 = vadd.f32 %v1709, %v1769
      %v1826 = vadd.f32 %v1710, %v1769
      %v1827 = vadd.f32 %v1711, %v1769
      %v1828 = vadd.f32 %v1712, %v1769
      %v1829 = vadd.f32 %v1713, %v1769
      %v1830 = vadd.f32 %v1714, %v1769
      %v1831 = vadd.f32 %v1715, %v1769
      %v1832 = vadd.f32 %v1716, %v1769
      %v1833 = vadd.f32 %v1717, %v1769
      %v1834 = vadd.f32 %v1718, %v1769
      %v1835 = vadd.f32 %v1719, %v1769
      %v1836 = vadd.f32 %v1720, %v1769
      %v1837 = vadd.f32 %v1721, %v1769
      %v1838 = vadd.f32 %v1722, %v1769
      %v1839 = vadd.f32 %v1723, %v1769
      %v1840 = vadd.f32 %v1724, %v1769
      %v1841 = vadd.f32 %v1725, %v1769
      %v1842 = vadd.f32 %v1726, %v1769
      %v1843 = vadd.f32 %v1727, %v1769
      %v1844 = vadd.f32 %v1728, %v1769
      %v1845 = vadd.f32 %v1729, %v1769
      %v1846 = vadd.f32 %v1730, %v1769
      %v1847 = vadd.f32 %v1731, %v1769
      %v1848 = vadd.f32 %v1732, %v1769
      %v1849 = vadd.f32 %v1733, %v1769
      %v1850 = vadd.f32 %v1734, %v1769
      %v1851 = vadd.f32 %v1735, %v1769
      %v1852 = vadd.f32 %v1736, %v1769
      %v1853 = vadd.f32 %v1737, %v1769
      %v1854 = vadd.f32 %v1738, %v1769
      %v1855 = vadd.f32 %v1739, %v1769
      %v1856 = vadd.f32 %v1740, %v1769
      %v1857 = vadd.f32 %v1741, %v1769
      %v1858 = vadd.f32 %v1742, %v1769
      %v1859 = vadd.f32 %v1743, %v1769
      %v1860 = vadd.f32 %v1744, %v1769
      %v1861 = vadd.f32 %v1745, %v1769
      %v1862 = vadd.f32 %v1746, %v1769
      %v1863 = vadd.f32 %v1747, %v1769
      %v1864 = vadd.f32 %v1748, %v1769
      %v1865 = vadd.f32 %v1749, %v1769
      %v1866 = vadd.f32 %v1750, %v1769
      %v1867 = vadd.f32 %v1751, %v1769
      %v1868 = vadd.f32 %v1752, %v1769
      %v1869 = vadd.f32 %v1753, %v1769
      %v1870 = vadd.f32 %v1754, %v1769
      %v1871 = vadd.f32 %v1755, %v1769
      %v1872 = vadd.f32 %v1756, %v1769
      %v1873 = vadd.f32 %v1757, %v1769
      %v1874 = vadd.f32 %v1758, %v1769
      %v1875 = vadd.f32 %v1759, %v1769
      %v1876 = vadd.f32 %v1760, %v1769
      %v1877 = vadd.f32 %v1761, %v1769
      %v1878 = vadd.f32 %v1762, %v1769
      %v1879 = vadd.f32 %v1763, %v1769
      %v1880 = vadd.f32 %v1764, %v1769
      %v1881 = vadd.f32 %v1765, %v1769
      %v1882 = vadd.f32 %v1766, %v1769
      %v1883 = vmax.f32 %v1771, 0.0
      %v1884 = vmax.f32 %v1772, 0.0
      %v1885 = vmax.f32 %v1773, 0.0
      %v1886 = vmax.f32 %v1774, 0.0
      %v1887 = vmax.f32 %v1775, 0.0
      %v1888 = vmax.f32 %v1776, 0.0
      %v1889 = vmax.f32 %v1777, 0.0
      %v1890 = vmax.f32 %v1778, 0.0
      %v1891 = vmax.f32 %v1779, 0.0
      %v1892 = vmax.f32 %v1780, 0.0
      %v1893 = vmax.f32 %v1781, 0.0
      %v1894 = vmax.f32 %v1782, 0.0
      %v1895 = vmax.f32 %v1783, 0.0
      %v1896 = vmax.f32 %v1784, 0.0
      %v1897 = vmax.f32 %v1785, 0.0
      %v1898 = vmax.f32 %v1786, 0.0
      %v1899 = vmax.f32 %v1787, 0.0
      %v1900 = vmax.f32 %v1788, 0.0
      %v1901 = vmax.f32 %v1789, 0.0
      %v1902 = vmax.f32 %v1790, 0.0
      %v1903 = vmax.f32 %v1791, 0.0
      %v1904 = vmax.f32 %v1792, 0.0
      %v1905 = vmax.f32 %v1793, 0.0
      %v1906 = vmax.f32 %v1794, 0.0
      %v1907 = vmax.f32 %v1795, 0.0
      %v1908 = vmax.f32 %v1796, 0.0
      %v1909 = vmax.f32 %v1797, 0.0
      %v1910 = vmax.f32 %v1798, 0.0
      %v1911 = vmax.f32 %v1799, 0.0
      %v1912 = vmax.f32 %v1800, 0.0
      %v1913 = vmax.f32 %v1801, 0.0
      %v1914 = vmax.f32 %v1802, 0.0
      %v1915 = vmax.f32 %v1803, 0.0
      %v1916 = vmax.f32 %v1804, 0.0
      %v1917 = vmax.f32 %v1805, 0.0
      %v1918 = vmax.f32 %v1806, 0.0
      %v1919 = vmax.f32 %v1807, 0.0
      %v1920 = vmax.f32 %v1808, 0.0
      %v1921 = vmax.f32 %v1809, 0.0
      %v1922 = vmax.f32 %v1810, 0.0
      %v1923 = vmax.f32 %v1811, 0.0
      %v1924 = vmax.f32 %v1812, 0.0
      %v1925 = vmax.f32 %v1813, 0.0
      %v1926 = vmax.f32 %v1814, 0.0
      %v1927 = vmax.f32 %v1815, 0.0
      %v1928 = vmax.f32 %v1816, 0.0
      %v1929 = vmax.f32 %v1817, 0.0
      %v1930 = vmax.f32 %v1818, 0.0
      %v1931 = vmax.f32 %v1819, 0.0
      %v1932 = vmax.f32 %v1820, 0.0
      %v1933 = vmax.f32 %v1821, 0.0
      %v1934 = vmax.f32 %v1822, 0.0
      %v1935 = vmax.f32 %v1823, 0.0
      %v1936 = vmax.f32 %v1824, 0.0
      %v1937 = vmax.f32 %v1825, 0.0
      %v1938 = vmax.f32 %v1826, 0.0
      %v1939 = vmax.f32 %v1827, 0.0
      %v1940 = vmax.f32 %v1828, 0.0
      %v1941 = vmax.f32 %v1829, 0.0
      %v1942 = vmax.f32 %v1830, 0.0
      %v1943 = vmax.f32 %v1831, 0.0
      %v1944 = vmax.f32 %v1832, 0.0
      %v1945 = vmax.f32 %v1833, 0.0
      %v1946 = vmax.f32 %v1834, 0.0
      %v1947 = vmax.f32 %v1835, 0.0
      %v1948 = vmax.f32 %v1836, 0.0
      %v1949 = vmax.f32 %v1837, 0.0
      %v1950 = vmax.f32 %v1838, 0.0
      %v1951 = vmax.f32 %v1839, 0.0
      %v1952 = vmax.f32 %v1840, 0.0
      %v1953 = vmax.f32 %v1841, 0.0
      %v1954 = vmax.f32 %v1842, 0.0
      %v1955 = vmax.f32 %v1843, 0.0
      %v1956 = vmax.f32 %v1844, 0.0
      %v1957 = vmax.f32 %v1845, 0.0
      %v1958 = vmax.f32 %v1846, 0.0
      %v1959 = vmax.f32 %v1847, 0.0
      %v1960 = vmax.f32 %v1848, 0.0
      %v1961 = vmax.f32 %v1849, 0.0
      %v1962 = vmax.f32 %v1850, 0.0
      %v1963 = vmax.f32 %v1851, 0.0
      %v1964 = vmax.f32 %v1852, 0.0
      %v1965 = vmax.f32 %v1853, 0.0
      %v1966 = vmax.f32 %v1854, 0.0
      %v1967 = vmax.f32 %v1855, 0.0
      %v1968 = vmax.f32 %v1856, 0.0
      %v1969 = vmax.f32 %v1857, 0.0
      %v1970 = vmax.f32 %v1858, 0.0
      %v1971 = vmax.f32 %v1859, 0.0
      %v1972 = vmax.f32 %v1860, 0.0
      %v1973 = vmax.f32 %v1861, 0.0
      %v1974 = vmax.f32 %v1862, 0.0
      %v1975 = vmax.f32 %v1863, 0.0
      %v1976 = vmax.f32 %v1864, 0.0
      %v1977 = vmax.f32 %v1865, 0.0
      %v1978 = vmax.f32 %v1866, 0.0
      %v1979 = vmax.f32 %v1867, 0.0
      %v1980 = vmax.f32 %v1868, 0.0
      %v1981 = vmax.f32 %v1869, 0.0
      %v1982 = vmax.f32 %v1870, 0.0
      %v1983 = vmax.f32 %v1871, 0.0
      %v1984 = vmax.f32 %v1872, 0.0
      %v1985 = vmax.f32 %v1873, 0.0
      %v1986 = vmax.f32 %v1874, 0.0
      %v1987 = vmax.f32 %v1875, 0.0
      %v1988 = vmax.f32 %v1876, 0.0
      %v1989 = vmax.f32 %v1877, 0.0
      %v1990 = vmax.f32 %v1878, 0.0
      %v1991 = vmax.f32 %v1879, 0.0
      %v1992 = vmax.f32 %v1880, 0.0
      %v1993 = vmax.f32 %v1881, 0.0
      %v1994 = vmax.f32 %v1882, 0.0
      %v1995 = vpack.c.bf16 %v1883, %v1883
      %v1996 = vpack.c.bf16 %v1884, %v1884
      %v1997 = vpack.c.bf16 %v1885, %v1885
      %v1998 = vpack.c.bf16 %v1886, %v1886
      %v1999 = vpack.c.bf16 %v1887, %v1887
      %v2000 = vpack.c.bf16 %v1888, %v1888
      %v2001 = vpack.c.bf16 %v1889, %v1889
      %v2002 = vpack.c.bf16 %v1890, %v1890
      %v2003 = vpack.c.bf16 %v1891, %v1891
      %v2004 = vpack.c.bf16 %v1892, %v1892
      %v2005 = vpack.c.bf16 %v1893, %v1893
      %v2006 = vpack.c.bf16 %v1894, %v1894
      %v2007 = vpack.c.bf16 %v1895, %v1895
      %v2008 = vpack.c.bf16 %v1896, %v1896
      %v2009 = vpack.c.bf16 %v1897, %v1897
      %v2010 = vpack.c.bf16 %v1898, %v1898
      %v2011 = vpack.c.bf16 %v1899, %v1899
      %v2012 = vpack.c.bf16 %v1900, %v1900
      %v2013 = vpack.c.bf16 %v1901, %v1901
      %v2014 = vpack.c.bf16 %v1902, %v1902
      %v2015 = vpack.c.bf16 %v1903, %v1903
      %v2016 = vpack.c.bf16 %v1904, %v1904
      %v2017 = vpack.c.bf16 %v1905, %v1905
      %v2018 = vpack.c.bf16 %v1906, %v1906
      %v2019 = vpack.c.bf16 %v1907, %v1907
      %v2020 = vpack.c.bf16 %v1908, %v1908
      %v2021 = vpack.c.bf16 %v1909, %v1909
      %v2022 = vpack.c.bf16 %v1910, %v1910
      %v2023 = vpack.c.bf16 %v1911, %v1911
      %v2024 = vpack.c.bf16 %v1912, %v1912
      %v2025 = vpack.c.bf16 %v1913, %v1913
      %v2026 = vpack.c.bf16 %v1914, %v1914
      %v2027 = vpack.c.bf16 %v1915, %v1915
      %v2028 = vpack.c.bf16 %v1916, %v1916
      %v2029 = vpack.c.bf16 %v1917, %v1917
      %v2030 = vpack.c.bf16 %v1918, %v1918
      %v2031 = vpack.c.bf16 %v1919, %v1919
      %v2032 = vpack.c.bf16 %v1920, %v1920
      %v2033 = vpack.c.bf16 %v1921, %v1921
      %v2034 = vpack.c.bf16 %v1922, %v1922
      %v2035 = vpack.c.bf16 %v1923, %v1923
      %v2036 = vpack.c.bf16 %v1924, %v1924
      %v2037 = vpack.c.bf16 %v1925, %v1925
      %v2038 = vpack.c.bf16 %v1926, %v1926
      %v2039 = vpack.c.bf16 %v1927, %v1927
      %v2040 = vpack.c.bf16 %v1928, %v1928
      %v2041 = vpack.c.bf16 %v1929, %v1929
      %v2042 = vpack.c.bf16 %v1930, %v1930
      %v2043 = vpack.c.bf16 %v1931, %v1931
      %v2044 = vpack.c.bf16 %v1932, %v1932
      %v2045 = vpack.c.bf16 %v1933, %v1933
      %v2046 = vpack.c.bf16 %v1934, %v1934
      %v2047 = vpack.c.bf16 %v1935, %v1935
      %v2048 = vpack.c.bf16 %v1936, %v1936
      %v2049 = vpack.c.bf16 %v1937, %v1937
      %v2050 = vpack.c.bf16 %v1938, %v1938
      %v2051 = vpack.c.bf16 %v1939, %v1939
      %v2052 = vpack.c.bf16 %v1940, %v1940
      %v2053 = vpack.c.bf16 %v1941, %v1941
      %v2054 = vpack.c.bf16 %v1942, %v1942
      %v2055 = vpack.c.bf16 %v1943, %v1943
      %v2056 = vpack.c.bf16 %v1944, %v1944
      %v2057 = vpack.c.bf16 %v1945, %v1945
      %v2058 = vpack.c.bf16 %v1946, %v1946
      %v2059 = vpack.c.bf16 %v1947, %v1947
      %v2060 = vpack.c.bf16 %v1948, %v1948
      %v2061 = vpack.c.bf16 %v1949, %v1949
      %v2062 = vpack.c.bf16 %v1950, %v1950
      %v2063 = vpack.c.bf16 %v1951, %v1951
      %v2064 = vpack.c.bf16 %v1952, %v1952
      %v2065 = vpack.c.bf16 %v1953, %v1953
      %v2066 = vpack.c.bf16 %v1954, %v1954
      %v2067 = vpack.c.bf16 %v1955, %v1955
      %v2068 = vpack.c.bf16 %v1956, %v1956
      %v2069 = vpack.c.bf16 %v1957, %v1957
      %v2070 = vpack.c.bf16 %v1958, %v1958
      %v2071 = vpack.c.bf16 %v1959, %v1959
      %v2072 = vpack.c.bf16 %v1960, %v1960
      %v2073 = vpack.c.bf16 %v1961, %v1961
      %v2074 = vpack.c.bf16 %v1962, %v1962
      %v2075 = vpack.c.bf16 %v1963, %v1963
      %v2076 = vpack.c.bf16 %v1964, %v1964
      %v2077 = vpack.c.bf16 %v1965, %v1965
      %v2078 = vpack.c.bf16 %v1966, %v1966
      %v2079 = vpack.c.bf16 %v1967, %v1967
      %v2080 = vpack.c.bf16 %v1968, %v1968
      %v2081 = vpack.c.bf16 %v1969, %v1969
      %v2082 = vpack.c.bf16 %v1970, %v1970
      %v2083 = vpack.c.bf16 %v1971, %v1971
      %v2084 = vpack.c.bf16 %v1972, %v1972
      %v2085 = vpack.c.bf16 %v1973, %v1973
      %v2086 = vpack.c.bf16 %v1974, %v1974
      %v2087 = vpack.c.bf16 %v1975, %v1975
      %v2088 = vpack.c.bf16 %v1976, %v1976
      %v2089 = vpack.c.bf16 %v1977, %v1977
      %v2090 = vpack.c.bf16 %v1978, %v1978
      %v2091 = vpack.c.bf16 %v1979, %v1979
      %v2092 = vpack.c.bf16 %v1980, %v1980
      %v2093 = vpack.c.bf16 %v1981, %v1981
      %v2094 = vpack.c.bf16 %v1982, %v1982
      %v2095 = vpack.c.bf16 %v1983, %v1983
      %v2096 = vpack.c.bf16 %v1984, %v1984
      %v2097 = vpack.c.bf16 %v1985, %v1985
      %v2098 = vpack.c.bf16 %v1986, %v1986
      %v2099 = vpack.c.bf16 %v1987, %v1987
      %v2100 = vpack.c.bf16 %v1988, %v1988
      %v2101 = vpack.c.bf16 %v1989, %v1989
      %v2102 = vpack.c.bf16 %v1990, %v1990
      %v2103 = vpack.c.bf16 %v1991, %v1991
      %v2104 = vpack.c.bf16 %v1992, %v1992
      %v2105 = vpack.c.bf16 %v1993, %v1993
      %v2106 = vpack.c.bf16 %v1994, %v1994
      %vm2107 = vcmask 60416
      %2108 = vst.msk [vmem:[%s202] sm:$0xf] %vm2107, %v1995
      %2109 = vst.msk [vmem:[%s202 + $0x4] sm:$0xf] %vm2107, %v1996
      %2110 = vst.msk [vmem:[%s202 + $0x8] sm:$0xf] %vm2107, %v1997
      %2111 = vst.msk [vmem:[%s202 + $0xc] sm:$0xf] %vm2107, %v1998
      %2112 = vst.msk [vmem:[%s202 + $0x10] sm:$0xf] %vm2107, %v1999
      %2113 = vst.msk [vmem:[%s202 + $0x14] sm:$0xf] %vm2107, %v2000
      %2114 = vst.msk [vmem:[%s202 + $0x18] sm:$0xf] %vm2107, %v2001
      %2115 = vst.msk [vmem:[%s202 + $0x1c] sm:$0xf] %vm2107, %v2002
      %2116 = vst.msk [vmem:[%s202 + $0x20] sm:$0xf] %vm2107, %v2003
      %2117 = vst.msk [vmem:[%s202 + $0x24] sm:$0xf] %vm2107, %v2004
      %2118 = vst.msk [vmem:[%s202 + $0x28] sm:$0xf] %vm2107, %v2005
      %2119 = vst.msk [vmem:[%s202 + $0x2c] sm:$0xf] %vm2107, %v2006
      %2120 = vst.msk [vmem:[%s202 + $0x30] sm:$0xf] %vm2107, %v2007
      %2121 = vst.msk [vmem:[%s202 + $0x34] sm:$0xf] %vm2107, %v2008
      %2122 = vst.msk [vmem:[%s202 + $0x38] sm:$0xf] %vm2107, %v2009
      %2123 = vst.msk [vmem:[%s202 + $0x3c] sm:$0xf] %vm2107, %v2010
      %2124 = vst.msk [vmem:[%s202 + $0x40] sm:$0xf] %vm2107, %v2011
      %2125 = vst.msk [vmem:[%s202 + $0x44] sm:$0xf] %vm2107, %v2012
      %2126 = vst.msk [vmem:[%s202 + $0x48] sm:$0xf] %vm2107, %v2013
      %2127 = vst.msk [vmem:[%s202 + $0x4c] sm:$0xf] %vm2107, %v2014
      %2128 = vst.msk [vmem:[%s202 + $0x50] sm:$0xf] %vm2107, %v2015
      %2129 = vst.msk [vmem:[%s202 + $0x54] sm:$0xf] %vm2107, %v2016
      %2130 = vst.msk [vmem:[%s202 + $0x58] sm:$0xf] %vm2107, %v2017
      %2131 = vst.msk [vmem:[%s202 + $0x5c] sm:$0xf] %vm2107, %v2018
      %2132 = vst.msk [vmem:[%s202 + $0x60] sm:$0xf] %vm2107, %v2019
      %2133 = vst.msk [vmem:[%s202 + $0x64] sm:$0xf] %vm2107, %v2020
      %2134 = vst.msk [vmem:[%s202 + $0x68] sm:$0xf] %vm2107, %v2021
      %2135 = vst.msk [vmem:[%s202 + $0x6c] sm:$0xf] %vm2107, %v2022
      %2136 = vst.msk [vmem:[%s202 + $0x70] sm:$0xf] %vm2107, %v2023
      %2137 = vst.msk [vmem:[%s202 + $0x74] sm:$0xf] %vm2107, %v2024
      %2138 = vst.msk [vmem:[%s202 + $0x78] sm:$0xf] %vm2107, %v2025
      %2139 = vst.msk [vmem:[%s202 + $0x7c] sm:$0xf] %vm2107, %v2026
      %2140 = vst.msk [vmem:[%s202 + $0x80] sm:$0xf] %vm2107, %v2027
      %2141 = vst.msk [vmem:[%s202 + $0x84] sm:$0xf] %vm2107, %v2028
      %2142 = vst.msk [vmem:[%s202 + $0x88] sm:$0xf] %vm2107, %v2029
      %2143 = vst.msk [vmem:[%s202 + $0x8c] sm:$0xf] %vm2107, %v2030
      %2144 = vst.msk [vmem:[%s202 + $0x90] sm:$0xf] %vm2107, %v2031
      %2145 = vst.msk [vmem:[%s202 + $0x94] sm:$0xf] %vm2107, %v2032
      %2146 = vst.msk [vmem:[%s202 + $0x98] sm:$0xf] %vm2107, %v2033
      %2147 = vst.msk [vmem:[%s202 + $0x9c] sm:$0xf] %vm2107, %v2034
      %2148 = vst.msk [vmem:[%s202 + $0xa0] sm:$0xf] %vm2107, %v2035
      %2149 = vst.msk [vmem:[%s202 + $0xa4] sm:$0xf] %vm2107, %v2036
      %2150 = vst.msk [vmem:[%s202 + $0xa8] sm:$0xf] %vm2107, %v2037
      %2151 = vst.msk [vmem:[%s202 + $0xac] sm:$0xf] %vm2107, %v2038
      %2152 = vst.msk [vmem:[%s202 + $0xb0] sm:$0xf] %vm2107, %v2039
      %2153 = vst.msk [vmem:[%s202 + $0xb4] sm:$0xf] %vm2107, %v2040
      %2154 = vst.msk [vmem:[%s202 + $0xb8] sm:$0xf] %vm2107, %v2041
      %2155 = vst.msk [vmem:[%s202 + $0xbc] sm:$0xf] %vm2107, %v2042
      %2156 = vst.msk [vmem:[%s202 + $0xc0] sm:$0xf] %vm2107, %v2043
      %2157 = vst.msk [vmem:[%s202 + $0xc4] sm:$0xf] %vm2107, %v2044
      %2158 = vst.msk [vmem:[%s202 + $0xc8] sm:$0xf] %vm2107, %v2045
      %2159 = vst.msk [vmem:[%s202 + $0xcc] sm:$0xf] %vm2107, %v2046
      %2160 = vst.msk [vmem:[%s202 + $0xd0] sm:$0xf] %vm2107, %v2047
      %2161 = vst.msk [vmem:[%s202 + $0xd4] sm:$0xf] %vm2107, %v2048
      %2162 = vst.msk [vmem:[%s202 + $0xd8] sm:$0xf] %vm2107, %v2049
      %2163 = vst.msk [vmem:[%s202 + $0xdc] sm:$0xf] %vm2107, %v2050
      %2164 = vst.msk [vmem:[%s202 + $0xe0] sm:$0xf] %vm2107, %v2051
      %2165 = vst.msk [vmem:[%s202 + $0xe4] sm:$0xf] %vm2107, %v2052
      %2166 = vst.msk [vmem:[%s202 + $0xe8] sm:$0xf] %vm2107, %v2053
      %2167 = vst.msk [vmem:[%s202 + $0xec] sm:$0xf] %vm2107, %v2054
      %2168 = vst.msk [vmem:[%s202 + $0xf0] sm:$0xf] %vm2107, %v2055
      %2169 = vst.msk [vmem:[%s202 + $0xf4] sm:$0xf] %vm2107, %v2056
      %2170 = vst.msk [vmem:[%s202 + $0xf8] sm:$0xf] %vm2107, %v2057
      %2171 = vst.msk [vmem:[%s202 + $0xfc] sm:$0xf] %vm2107, %v2058
      %2172 = vst.msk [vmem:[%s202 + $0x100] sm:$0xf] %vm2107, %v2059
      %2173 = vst.msk [vmem:[%s202 + $0x104] sm:$0xf] %vm2107, %v2060
      %2174 = vst.msk [vmem:[%s202 + $0x108] sm:$0xf] %vm2107, %v2061
      %2175 = vst.msk [vmem:[%s202 + $0x10c] sm:$0xf] %vm2107, %v2062
      %2176 = vst.msk [vmem:[%s202 + $0x110] sm:$0xf] %vm2107, %v2063
      %2177 = vst.msk [vmem:[%s202 + $0x114] sm:$0xf] %vm2107, %v2064
      %2178 = vst.msk [vmem:[%s202 + $0x118] sm:$0xf] %vm2107, %v2065
      %2179 = vst.msk [vmem:[%s202 + $0x11c] sm:$0xf] %vm2107, %v2066
      %2180 = vst.msk [vmem:[%s202 + $0x120] sm:$0xf] %vm2107, %v2067
      %2181 = vst.msk [vmem:[%s202 + $0x124] sm:$0xf] %vm2107, %v2068
      %2182 = vst.msk [vmem:[%s202 + $0x128] sm:$0xf] %vm2107, %v2069
      %2183 = vst.msk [vmem:[%s202 + $0x12c] sm:$0xf] %vm2107, %v2070
      %2184 = vst.msk [vmem:[%s202 + $0x130] sm:$0xf] %vm2107, %v2071
      %2185 = vst.msk [vmem:[%s202 + $0x134] sm:$0xf] %vm2107, %v2072
      %2186 = vst.msk [vmem:[%s202 + $0x138] sm:$0xf] %vm2107, %v2073
      %2187 = vst.msk [vmem:[%s202 + $0x13c] sm:$0xf] %vm2107, %v2074
      %2188 = vst.msk [vmem:[%s202 + $0x140] sm:$0xf] %vm2107, %v2075
      %2189 = vst.msk [vmem:[%s202 + $0x144] sm:$0xf] %vm2107, %v2076
      %2190 = vst.msk [vmem:[%s202 + $0x148] sm:$0xf] %vm2107, %v2077
      %2191 = vst.msk [vmem:[%s202 + $0x14c] sm:$0xf] %vm2107, %v2078
      %2192 = vst.msk [vmem:[%s202 + $0x150] sm:$0xf] %vm2107, %v2079
      %2193 = vst.msk [vmem:[%s202 + $0x154] sm:$0xf] %vm2107, %v2080
      %2194 = vst.msk [vmem:[%s202 + $0x158] sm:$0xf] %vm2107, %v2081
      %2195 = vst.msk [vmem:[%s202 + $0x15c] sm:$0xf] %vm2107, %v2082
      %2196 = vst.msk [vmem:[%s202 + $0x160] sm:$0xf] %vm2107, %v2083
      %2197 = vst.msk [vmem:[%s202 + $0x164] sm:$0xf] %vm2107, %v2084
      %2198 = vst.msk [vmem:[%s202 + $0x168] sm:$0xf] %vm2107, %v2085
      %2199 = vst.msk [vmem:[%s202 + $0x16c] sm:$0xf] %vm2107, %v2086
      %2200 = vst.msk [vmem:[%s202 + $0x170] sm:$0xf] %vm2107, %v2087
      %2201 = vst.msk [vmem:[%s202 + $0x174] sm:$0xf] %vm2107, %v2088
      %2202 = vst.msk [vmem:[%s202 + $0x178] sm:$0xf] %vm2107, %v2089
      %2203 = vst.msk [vmem:[%s202 + $0x17c] sm:$0xf] %vm2107, %v2090
      %2204 = vst.msk [vmem:[%s202 + $0x180] sm:$0xf] %vm2107, %v2091
      %2205 = vst.msk [vmem:[%s202 + $0x184] sm:$0xf] %vm2107, %v2092
      %2206 = vst.msk [vmem:[%s202 + $0x188] sm:$0xf] %vm2107, %v2093
      %2207 = vst.msk [vmem:[%s202 + $0x18c] sm:$0xf] %vm2107, %v2094
      %2208 = vst.msk [vmem:[%s202 + $0x190] sm:$0xf] %vm2107, %v2095
      %2209 = vst.msk [vmem:[%s202 + $0x194] sm:$0xf] %vm2107, %v2096
      %2210 = vst.msk [vmem:[%s202 + $0x198] sm:$0xf] %vm2107, %v2097
      %2211 = vst.msk [vmem:[%s202 + $0x19c] sm:$0xf] %vm2107, %v2098
      %2212 = vst.msk [vmem:[%s202 + $0x1a0] sm:$0xf] %vm2107, %v2099
      %2213 = vst.msk [vmem:[%s202 + $0x1a4] sm:$0xf] %vm2107, %v2100
      %2214 = vst.msk [vmem:[%s202 + $0x1a8] sm:$0xf] %vm2107, %v2101
      %2215 = vst.msk [vmem:[%s202 + $0x1ac] sm:$0xf] %vm2107, %v2102
      %2216 = vst.msk [vmem:[%s202 + $0x1b0] sm:$0xf] %vm2107, %v2103
      %2217 = vst.msk [vmem:[%s202 + $0x1b4] sm:$0xf] %vm2107, %v2104
      %2218 = vst.msk [vmem:[%s202 + $0x1b8] sm:$0xf] %vm2107, %v2105
      %2219 = vst.msk [vmem:[%s202 + $0x1bc] sm:$0xf] %vm2107, %v2106
      %s2220 = smul.u32 112, %s15
      %p2221 = scmp.lt.s32.totalorder %s2220, 3135
      %s2222 = scalar_select %p2221, %s2220, 3135
      %s2223 = smul.addr %s2222, 4
      %s2224 = scalar_lea.vmem %s4, %s2223
      // Predicated region
      $region37: #{conv_im2col_bn.1} parent=35 // pred_check
        %p2225 = pneg %p122
      $region38: #{conv_im2col_bn.1} parent=35 // pred_check_branch
        %2227 = sbr.rel (%p2225) target = $region40
      $region39: #{conv_im2col_bn.1} parent=35 // pred_region
        %s2228 = smul.u32 112, %s15
      $region40: #{conv_im2col_bn.1} parent=35 // pred_fallthru
        _
    $region36: #{conv_im2col_bn.1} parent=5 // pred_fallthru
      _
    %p2229 = scmp.le.s32.totalorder 2, %s10
    // Predicated region
    $region41: #{conv_im2col_bn.1} parent=5 // pred_check
      %p2230 = pneg %p2229
    $region42: #{conv_im2col_bn.1} parent=5 // pred_check_branch
      %2232 = sbr.rel (%p2230) target = $region44
    $region43: #{conv_im2col_bn.1} parent=5 // pred_region
      %s2233 = ssub.s32 %s10, 2
      // Predicated region
      $region45: #{conv_im2col_bn.1} parent=43 // pred_check
        %p2234 = pneg %p128
      $region46: #{conv_im2col_bn.1} parent=43 // pred_check_branch
        %2236 = sbr.rel (%p2234) target = $region48
      $region47: #{conv_im2col_bn.1} parent=43 // pred_region
        %s2237 = smul.u32 112, %s16
        %p2238 = scmp.lt.s32.totalorder %s2237, 3135
        %s2239 = scalar_select %p2238, %s2237, 3135
        %s2240 = smul.addr %s2239, 4
        %s2241 = scalar_lea.vmem %s4, %s2240
      $region48: #{conv_im2col_bn.1} parent=43 // pred_fallthru
        _
    $region44: #{conv_im2col_bn.1} parent=5 // pred_fallthru
      _
  $region6: #{conv_im2col_bn.1} parent=0 // loop_footer
    %s14 = sadd.s32 1, %s10
  $region7: #{conv_im2col_bn.1} parent=0 // loop_footer_branch
    %9 = sbr.rel target = $region3
  $region8: #{conv_im2col_bn.1} parent=0 // loop_exit
    _

</llo_original>
